<compile_context>
chip_gen: v6e
topology: v6e:2x2x1
jax: 0.10.0
libtpu: 0.0.40
codegen_flags: <defaults>
</compile_context>

<pallas_src>
import functools
import math

import jax
import jax.numpy as jnp
from jax.experimental import pallas as pl
from jax.experimental.pallas import tpu as pltpu


def _round_up(a, b):
    return ((a + b - 1) // b) * b


def _pick_vmem_limit():
    """Scoped VMEM limit: generous on 128-MiB parts (v5e/v6e), conservative on v7x."""
    try:
        phys = pltpu.get_tpu_info().vmem_capacity_bytes
    except Exception:
        phys = 128 * 1024 * 1024
    return int(min(96 * 1024 * 1024, max(32 * 1024 * 1024, phys * 7 // 10)))


def _choose_tile_rows(n_rows, row_bytes, vmem_budget, row_align, max_tn):
    """Largest TN (multiple of row_align) fitting the budget; even grid when it splits."""
    tn = max(row_align, (vmem_budget // max(row_bytes, 1)) // row_align * row_align)
    tn = min(tn, max_tn, _round_up(n_rows, row_align))
    steps = -(-n_rows // tn)
    if steps > 1 and steps % 2 == 1:      # v7x has 2 TensorCores: prefer an even split
        steps += 1
    tn = _round_up(-(-n_rows // steps), row_align)
    return tn, steps * tn                  # (TN, N_pad)


def _const_spec(shape, index_map):
    """Grid-invariant operand: single-buffered (falls back if pipeline_mode is absent)."""
    try:
        return pl.BlockSpec(shape, index_map, pipeline_mode=pl.Buffered(1))
    except TypeError:
        return pl.BlockSpec(shape, index_map)


# ------------------------------ fused kernel -------------------------------- #

def _hyperconv_block_kernel(z_ref, xw_ref, w1c_ref, b1c_ref, w2c_ref, b2c_ref,
                            wrs_ref, brs_ref, out_ref, *,
                            cin, cout, kernel_size, dilation, s_len, use_vpu_bmm):
    f32 = jnp.float32
    cd = w1c_ref.dtype
    cink = cin * kernel_size
    pad = dilation * (kernel_size - 1)
    tn = z_ref.shape[0]

    # ---- fused weight/bias regressors: two matmuls, results stay in VMEM ----
    h = jnp.dot(z_ref[...], w1c_ref[...], preferred_element_type=f32) + b1c_ref[...]
    h = jnp.maximum(h, 0.0)                                        # (TN, 2*hidden) f32
    wb = jnp.dot(h.astype(cd), w2c_ref[...],
                 preferred_element_type=f32) + b2c_ref[...]        # (TN, CinK*Cout+Cout)
    wflat = wb[:, :cink * cout]                                    # per-row hyper weights
    bias = wb[:, cink * cout:]                                     # per-row hyper bias

    # ---- hyper conv: dilated taps built in-kernel from the (S+pad) window ----
    xw = xw_ref[...]                                               # (TN, S+pad, Cin) f32
    if use_vpu_bmm:
        # Small contraction: unrolled broadcast-FMA on the VPU (f32), MXU stays free.
        y = jnp.broadcast_to(bias[:, None, :], (tn, s_len, cout))
        for i in range(kernel_size):
            off = (kernel_size - 1 - i) * dilation
            tap = xw[:, off:off + s_len, :]                        # (TN, S, Cin)
            for j in range(cin):
                c = i * cin + j
                wc = wflat[:, c * cout:(c + 1) * cout]             # (TN, Cout)
                y = y + tap[:, :, j:j + 1] * wc[:, None, :]
    else:
        xc = jnp.concatenate(
            [xw[:, (kernel_size - 1 - i) * dilation:
                   (kernel_size - 1 - i) * dilation + s_len, :]
             for i in range(kernel_size)], axis=-1).astype(cd)     # (TN, S, CinK)
        w3 = wflat.reshape(tn, cink, cout).astype(cd)
        y = jnp.einsum("nsc,nco->nso", xc, w3,
                       preferred_element_type=f32) + bias[:, None, :]
    y = jnp.sin(y)                                                 # (TN, S, Cout) f32

    # ---- fused [residual | skip] 1x1 conv: ONE 2-D matmul, lane-dense output ----
    y2 = y.reshape(tn * s_len, cout).astype(cd)
    rs = jnp.dot(y2, wrs_ref[...], preferred_element_type=f32) + brs_ref[...]
    rs = rs.reshape(tn, s_len, 2 * cout)
    xo = xw[:, pad:pad + s_len, :]                                 # original x chunk, f32
    out_ref[...] = jnp.concatenate([(rs[:, :, :cout] + xo) * 0.5,
                                    rs[:, :, cout:]], axis=-1)


# -------------------------------- wrapper ------------------------------------ #

def hyperconv_block_pallas(x, z, p, kernel_size, dilation, causal=True,
                           compute_dtype=jnp.bfloat16, max_tile_rows=512):
    """x: (B, ch, T), z: (B, z_dim, K); returns ((B, ch, T), (B, ch, T))."""
    f32 = jnp.float32
    cd = jnp.dtype(compute_dtype)
    B, Cin, T = x.shape
    zdim, K = z.shape[1], z.shape[2]
    assert T % K == 0
    S = T // K
    Cout = Cin                       # HyperConvBlock: ch_in == ch_out == channels
    CinK = Cin * kernel_size
    hidden = p["W1"].shape[0]
    N = B * K
    pad = dilation * (kernel_size - 1)

    # ---- glue: time-major padded x windows, one (S+pad, Cin) slab per (b, k) row ----
    if causal:
        xp = jnp.pad(x, ((0, 0), (0, 0), (pad, 0)))
    else:
        xp = jnp.pad(x, ((0, 0), (0, 0), (pad // 2, pad - pad // 2)))
    xpt = jnp.transpose(xp, (0, 2, 1))                                  # (B, T+pad, Cin)
    win_idx = jnp.arange(K)[:, None] * S + jnp.arange(S + pad)[None, :]
    xwin = xpt[:, win_idx, :].reshape(N, S + pad, Cin).astype(f32)
    # TODO(synk): a fully in-kernel variant would DMA the overlapping (S+pad) windows
    # straight from one (B, T+pad, Cin) HBM copy (pl.ANY + manual copies), removing the
    # small pad-overlap duplication of this gather as well.
    zflat = jnp.transpose(z, (0, 2, 1)).reshape(N, zdim).astype(cd)

    # ---- tile rows: bf16 needs 16-row packing; size from the VMEM budget ----
    row_align = 8 if cd.itemsize >= 4 else 16
    row_bytes = (2 * ((S + pad) * Cin * 4 + zdim * cd.itemsize + S * 2 * Cout * 4)
                 + (2 * hidden + (CinK + 1) * Cout) * 4 + 4 * S * Cout * 4)
    vmem_limit = _pick_vmem_limit()
    TN, N_pad = _choose_tile_rows(N, row_bytes, vmem_limit // 2, row_align, max_tile_rows)
    if N_pad != N:
        pn = N_pad - N
        zflat = jnp.pad(zflat, ((0, pn), (0, 0)))
        xwin = jnp.pad(xwin, ((0, pn), (0, 0), (0, 0)))

    # ---- host-packed parameters ----
    w1c = jnp.concatenate([p["W1"].T, p["Wb1"].T], axis=1).astype(cd)     # (zdim, 2h)
    b1c = jnp.concatenate([p["b1"], p["bb1"]])[None, :].astype(f32)       # (1, 2h)
    w2c = jnp.zeros((2 * hidden, CinK * Cout + Cout), f32)                # block diagonal
    w2c = w2c.at[:hidden, :CinK * Cout].set(p["W2"].T)
    w2c = w2c.at[hidden:, CinK * Cout:].set(p["Wb2"].T)
    w2c = w2c.astype(cd)
    b2c = jnp.concatenate([p["b2"], p["bb2"]])[None, :].astype(f32)
    wrs = jnp.concatenate([p["Wres"].T, p["Wskip"].T], axis=1).astype(cd)  # (Cout, 2*Cout)
    brs = jnp.concatenate([p["bres"], p["bskip"]])[None, :].astype(f32)    # (1, 2*Cout)

    use_vpu_bmm = CinK <= 32
    grid = (N_pad // TN,)
    cparams = pltpu.CompilerParams(
        dimension_semantics=("parallel",),
        vmem_limit_bytes=vmem_limit)

    kernel = functools.partial(
        _hyperconv_block_kernel, cin=Cin, cout=Cout, kernel_size=kernel_size,
        dilation=dilation, s_len=S, use_vpu_bmm=use_vpu_bmm)

    fused = pl.pallas_call(
        kernel,
        out_shape=jax.ShapeDtypeStruct((N_pad, S, 2 * Cout), f32),
        grid=grid,
        in_specs=[
            pl.BlockSpec((TN, zdim), lambda i: (i, 0)),
            pl.BlockSpec((TN, S + pad, Cin), lambda i: (i, 0, 0)),
            _const_spec((zdim, 2 * hidden), lambda i: (0, 0)),
            _const_spec((1, 2 * hidden), lambda i: (0, 0)),
            _const_spec((2 * hidden, CinK * Cout + Cout), lambda i: (0, 0)),
            _const_spec((1, CinK * Cout + Cout), lambda i: (0, 0)),
            _const_spec((Cout, 2 * Cout), lambda i: (0, 0)),
            _const_spec((1, 2 * Cout), lambda i: (0, 0)),
        ],
        out_specs=pl.BlockSpec((TN, S, 2 * Cout), lambda i: (i, 0, 0)),
        compiler_params=cparams,
    )(zflat, xwin, w1c, b1c, w2c, b2c, wrs, brs)

    fused = jnp.transpose(fused[:N].reshape(B, T, 2 * Cout), (0, 2, 1))   # (B, 2*Cout, T)
    return fused[:, :Cout, :], fused[:, Cout:, :]


# --------------------------- pure-JAX reference ----------------------------- #

def reference_forward(x, z, p, kernel_size, dilation, causal=True,
                      compute_dtype=jnp.float32):
    """compute_dtype=float32 is exactly the PyTorch module math; bfloat16 mirrors the
    mixed-precision kernel (bf16 matmul operands, f32 accumulation and elementwise)."""
    f32 = jnp.float32
    cd = jnp.dtype(compute_dtype)
    B, Cin, T = x.shape
    K = z.shape[-1]
    S = T // K
    Cout = Cin
    CinK = Cin * kernel_size
    pad = dilation * (kernel_size - 1)
    if causal:
        xp = jnp.pad(x, ((0, 0), (0, 0), (pad, 0)))
    else:
        xp = jnp.pad(x, ((0, 0), (0, 0), (pad // 2, pad - pad // 2)))
    start, end = pad, xp.shape[-1]
    xc = jnp.concatenate(
        [xp[:, :, start - i * dilation:end - i * dilation] for i in range(kernel_size)],
        axis=1)
    xc = jnp.transpose(xc, (0, 2, 1)).reshape(B * K, S, CinK)             # f32
    zt = jnp.transpose(z, (0, 2, 1)).reshape(B * K, -1).astype(cd)

    h = jax.nn.relu(jnp.dot(zt, p["W1"].T.astype(cd), preferred_element_type=f32) + p["b1"])
    wflat = jnp.dot(h.astype(cd), p["W2"].T.astype(cd), preferred_element_type=f32) + p["b2"]
    w = wflat.reshape(B * K, CinK, Cout)
    hb = jax.nn.relu(jnp.dot(zt, p["Wb1"].T.astype(cd), preferred_element_type=f32) + p["bb1"])
    bias = jnp.dot(hb.astype(cd), p["Wb2"].T.astype(cd), preferred_element_type=f32) + p["bb2"]

    if CinK <= 32:   # mirrors the kernel's f32 VPU contraction path
        y = jnp.einsum("nsc,nco->nso", xc, w, preferred_element_type=f32)
    else:            # mirrors the kernel's cd-operand MXU contraction path
        y = jnp.einsum("nsc,nco->nso", xc.astype(cd), w.astype(cd),
                       preferred_element_type=f32)
    y = jnp.sin(y + bias[:, None, :])

    wrs = jnp.concatenate([p["Wres"].T, p["Wskip"].T], axis=1).astype(cd)
    brs = jnp.concatenate([p["bres"], p["bskip"]])
    rs = jnp.einsum("nso,op->nsp", y.astype(cd), wrs, preferred_element_type=f32) + brs

    xo = jnp.transpose(x, (0, 2, 1)).reshape(B * K, S, Cin)
    out = (rs[..., :Cout] + xo) * 0.5
    skp = rs[..., Cout:]
    out = jnp.transpose(out.reshape(B, T, Cout), (0, 2, 1))
    skp = jnp.transpose(skp.reshape(B, T, Cout), (0, 2, 1))
    return out, skp


# ---------------------------------- main ------------------------------------ #

def init_params(key, channels, z_dim, kernel_size, hidden=32):
    C = channels
    CinK = C * kernel_size
    ks = jax.random.split(key, 12)
    u = lambda k, shape, s: jax.random.uniform(k, shape, jnp.float32, -s, s)
    return dict(
        W1=u(ks[0], (hidden, z_dim), 0.3),
        b1=u(ks[1], (hidden,), 0.3),
        W2=u(ks[2], (CinK * C, hidden), 0.3),
        b2=u(ks[3], (CinK * C,), math.sqrt(6.0 / (C * kernel_size))),
        Wb1=u(ks[4], (hidden, z_dim), 0.3),
        bb1=u(ks[5], (hidden,), 0.3),
        Wb2=u(ks[6], (C, hidden), 0.3),
        bb2=u(ks[7], (C,), 0.3),
        Wres=u(ks[8], (C, C), math.sqrt(6.0 / C)),
        bres=u(ks[9], (C,), 0.1),
        Wskip=u(ks[10], (C, C), math.sqrt(6.0 / C)),
        bskip=u(ks[11], (C,), 0.1),
    )


if __name__ == "__main__":
    B, channels, T = 2, 4, 16
    z_dim, K = 8, 4
    kernel_size, dilation, causal = 3, 1, True

    key = jax.random.PRNGKey(0)
    kp, kx, kz = jax.random.split(key, 3)
    params = init_params(kp, channels, z_dim, kernel_size)
    x = jax.random.normal(kx, (B, channels, T), jnp.float32)
    z = jax.random.normal(kz, (B, z_dim, K), jnp.float32)

    forward = jax.jit(hyperconv_block_pallas, static_argnums=(3, 4, 5, 6))

    # f32 path: exact module semantics, tight check against the pure-JAX reference.
    out32, skip32 = forward(x, z, params, kernel_size, dilation, causal, jnp.float32)
    out32, skip32 = jax.block_until_ready((out32, skip32))
    ref_out, ref_skip = reference_forward(x, z, params, kernel_size, dilation, causal,
                                          compute_dtype=jnp.float32)
    assert out32.shape == (B, channels, T) and skip32.shape == (B, channels, T)
    assert jnp.allclose(out32, ref_out, atol=1e-4, rtol=1e-4)
    assert jnp.allclose(skip32, ref_skip, atol=1e-4, rtol=1e-4)

    # bf16 MXU-operand path (f32 accumulation / elementwise), checked against a
    # reference mirroring the same mixed-precision casts.
    outbf, skipbf = forward(x, z, params, kernel_size, dilation, causal, jnp.bfloat16)
    outbf, skipbf = jax.block_until_ready((outbf, skipbf))
    refb_out, refb_skip = reference_forward(x, z, params, kernel_size, dilation, causal,
                                            compute_dtype=jnp.bfloat16)
    assert jnp.allclose(outbf, refb_out, atol=1e-2, rtol=1e-2)
    assert jnp.allclose(skipbf, refb_skip, atol=1e-2, rtol=1e-2)

    print("KERNEL_OK")
</pallas_src>

<mosaic_0001>
module attributes {stable_mosaic.version = 11 : i64} {
  func.func @_hyperconv_block_kernel(%arg0: i32, %arg1: memref<8x8xf32, #tpu.memory_space<vmem>>, %arg2: memref<8x6x4xf32, #tpu.memory_space<vmem>>, %arg3: memref<8x64xf32, #tpu.memory_space<vmem>>, %arg4: memref<1x64xf32, #tpu.memory_space<vmem>>, %arg5: memref<64x52xf32, #tpu.memory_space<vmem>>, %arg6: memref<1x52xf32, #tpu.memory_space<vmem>>, %arg7: memref<4x8xf32, #tpu.memory_space<vmem>>, %arg8: memref<1x8xf32, #tpu.memory_space<vmem>>, %arg9: memref<8x4x8xf32, #tpu.memory_space<vmem>>) attributes {dimension_semantics = [#tpu.dimension_semantics<parallel>], iteration_bounds = array<i64: 1>, scalar_prefetch = 0 : i64, scratch_operands = 0 : i64, tpu.core_type = #tpu.core_type<tc>, window_params = [{transform_indices = @transform_0, window_bounds = array<i64: 8, 8>}, {transform_indices = @transform_1, window_bounds = array<i64: 8, 6, 4>}, {pipeline_mode = #tpu.pipeline_mode<synchronous>, transform_indices = @transform_2, window_bounds = array<i64: 8, 64>}, {pipeline_mode = #tpu.pipeline_mode<synchronous>, transform_indices = @transform_3, window_bounds = array<i64: 1, 64>}, {pipeline_mode = #tpu.pipeline_mode<synchronous>, transform_indices = @transform_4, window_bounds = array<i64: 64, 52>}, {pipeline_mode = #tpu.pipeline_mode<synchronous>, transform_indices = @transform_5, window_bounds = array<i64: 1, 52>}, {pipeline_mode = #tpu.pipeline_mode<synchronous>, transform_indices = @transform_6, window_bounds = array<i64: 4, 8>}, {pipeline_mode = #tpu.pipeline_mode<synchronous>, transform_indices = @transform_7, window_bounds = array<i64: 1, 8>}, {transform_indices = @transform_8, window_bounds = array<i64: 8, 4, 8>}]} {
    %c0 = arith.constant 0 : index
    %c0_0 = arith.constant 0 : index
    %0 = vector.load %arg1[%c0, %c0_0] : memref<8x8xf32, #tpu.memory_space<vmem>>, vector<8x8xf32>
    %c0_1 = arith.constant 0 : index
    %c0_2 = arith.constant 0 : index
    %1 = vector.load %arg3[%c0_1, %c0_2] : memref<8x64xf32, #tpu.memory_space<vmem>>, vector<8x64xf32>
    %cst = arith.constant dense<0.000000e+00> : vector<8x64xf32>
    %2 = tpu.matmul %0, %1, %cst {dimension_numbers = #tpu.dot_dimension_numbers<[1], [0], [0], [1], [0, 0, 1, 1], [], []>} : vector<8x8xf32>, vector<8x64xf32>, vector<8x64xf32> -> vector<8x64xf32>
    %c0_3 = arith.constant 0 : index
    %c0_4 = arith.constant 0 : index
    %3 = vector.load %arg4[%c0_3, %c0_4] : memref<1x64xf32, #tpu.memory_space<vmem>>, vector<1x64xf32>
    %4 = vector.broadcast %3 : vector<1x64xf32> to vector<8x64xf32>
    %5 = arith.addf %2, %4 : vector<8x64xf32>
    %cst_5 = arith.constant 0.000000e+00 : f32
    %6 = vector.broadcast %cst_5 : f32 to vector<8x64xf32>
    %7 = arith.maximumf %5, %6 : vector<8x64xf32>
    %c0_6 = arith.constant 0 : index
    %c0_7 = arith.constant 0 : index
    %8 = vector.load %arg5[%c0_6, %c0_7] : memref<64x52xf32, #tpu.memory_space<vmem>>, vector<64x52xf32>
    %cst_8 = arith.constant dense<0.000000e+00> : vector<8x52xf32>
    %9 = tpu.matmul %7, %8, %cst_8 {dimension_numbers = #tpu.dot_dimension_numbers<[1], [0], [0], [1], [0, 0, 1, 1], [], []>} : vector<8x64xf32>, vector<64x52xf32>, vector<8x52xf32> -> vector<8x52xf32>
    %c0_9 = arith.constant 0 : index
    %c0_10 = arith.constant 0 : index
    %10 = vector.load %arg6[%c0_9, %c0_10] : memref<1x52xf32, #tpu.memory_space<vmem>>, vector<1x52xf32>
    %11 = vector.broadcast %10 : vector<1x52xf32> to vector<8x52xf32>
    %12 = arith.addf %9, %11 : vector<8x52xf32>
    %13 = vector.extract_strided_slice %12 {offsets = [0, 0], sizes = [8, 48], strides = [1, 1]} : vector<8x52xf32> to vector<8x48xf32>
    %14 = vector.extract_strided_slice %12 {offsets = [0, 48], sizes = [8, 4], strides = [1, 1]} : vector<8x52xf32> to vector<8x4xf32>
    %c0_11 = arith.constant 0 : index
    %c0_12 = arith.constant 0 : index
    %c0_13 = arith.constant 0 : index
    %15 = vector.load %arg2[%c0_11, %c0_12, %c0_13] : memref<8x6x4xf32, #tpu.memory_space<vmem>>, vector<8x6x4xf32>
    %16 = vector.shape_cast %14 : vector<8x4xf32> to vector<8x1x4xf32>
    %17 = vector.shape_cast %16 : vector<8x1x4xf32> to vector<8x1x4xf32>
    %18 = vector.broadcast %17 : vector<8x1x4xf32> to vector<8x4x4xf32>
    %19 = vector.extract_strided_slice %15 {offsets = [0, 2, 0], sizes = [8, 4, 4], strides = [1, 1, 1]} : vector<8x6x4xf32> to vector<8x4x4xf32>
    %20 = vector.extract_strided_slice %13 {offsets = [0, 0], sizes = [8, 4], strides = [1, 1]} : vector<8x48xf32> to vector<8x4xf32>
    %21 = vector.extract_strided_slice %19 {offsets = [0, 0, 0], sizes = [8, 4, 1], strides = [1, 1, 1]} : vector<8x4x4xf32> to vector<8x4x1xf32>
    %22 = vector.shape_cast %20 : vector<8x4xf32> to vector<8x1x4xf32>
    %23 = vector.broadcast %21 : vector<8x4x1xf32> to vector<8x4x4xf32>
    %24 = vector.broadcast %22 : vector<8x1x4xf32> to vector<8x4x4xf32>
    %25 = arith.mulf %23, %24 : vector<8x4x4xf32>
    %26 = arith.addf %18, %25 : vector<8x4x4xf32>
    %27 = vector.extract_strided_slice %13 {offsets = [0, 4], sizes = [8, 4], strides = [1, 1]} : vector<8x48xf32> to vector<8x4xf32>
    %28 = vector.extract_strided_slice %19 {offsets = [0, 0, 1], sizes = [8, 4, 1], strides = [1, 1, 1]} : vector<8x4x4xf32> to vector<8x4x1xf32>
    %29 = vector.shape_cast %27 : vector<8x4xf32> to vector<8x1x4xf32>
    %30 = vector.broadcast %28 : vector<8x4x1xf32> to vector<8x4x4xf32>
    %31 = vector.broadcast %29 : vector<8x1x4xf32> to vector<8x4x4xf32>
    %32 = arith.mulf %30, %31 : vector<8x4x4xf32>
    %33 = arith.addf %26, %32 : vector<8x4x4xf32>
    %34 = vector.extract_strided_slice %13 {offsets = [0, 8], sizes = [8, 4], strides = [1, 1]} : vector<8x48xf32> to vector<8x4xf32>
    %35 = vector.extract_strided_slice %19 {offsets = [0, 0, 2], sizes = [8, 4, 1], strides = [1, 1, 1]} : vector<8x4x4xf32> to vector<8x4x1xf32>
    %36 = vector.shape_cast %34 : vector<8x4xf32> to vector<8x1x4xf32>
    %37 = vector.broadcast %35 : vector<8x4x1xf32> to vector<8x4x4xf32>
    %38 = vector.broadcast %36 : vector<8x1x4xf32> to vector<8x4x4xf32>
    %39 = arith.mulf %37, %38 : vector<8x4x4xf32>
    %40 = arith.addf %33, %39 : vector<8x4x4xf32>
    %41 = vector.extract_strided_slice %13 {offsets = [0, 12], sizes = [8, 4], strides = [1, 1]} : vector<8x48xf32> to vector<8x4xf32>
    %42 = vector.extract_strided_slice %19 {offsets = [0, 0, 3], sizes = [8, 4, 1], strides = [1, 1, 1]} : vector<8x4x4xf32> to vector<8x4x1xf32>
    %43 = vector.shape_cast %41 : vector<8x4xf32> to vector<8x1x4xf32>
    %44 = vector.broadcast %42 : vector<8x4x1xf32> to vector<8x4x4xf32>
    %45 = vector.broadcast %43 : vector<8x1x4xf32> to vector<8x4x4xf32>
    %46 = arith.mulf %44, %45 : vector<8x4x4xf32>
    %47 = arith.addf %40, %46 : vector<8x4x4xf32>
    %48 = vector.extract_strided_slice %15 {offsets = [0, 1, 0], sizes = [8, 4, 4], strides = [1, 1, 1]} : vector<8x6x4xf32> to vector<8x4x4xf32>
    %49 = vector.extract_strided_slice %13 {offsets = [0, 16], sizes = [8, 4], strides = [1, 1]} : vector<8x48xf32> to vector<8x4xf32>
    %50 = vector.extract_strided_slice %48 {offsets = [0, 0, 0], sizes = [8, 4, 1], strides = [1, 1, 1]} : vector<8x4x4xf32> to vector<8x4x1xf32>
    %51 = vector.shape_cast %49 : vector<8x4xf32> to vector<8x1x4xf32>
    %52 = vector.broadcast %50 : vector<8x4x1xf32> to vector<8x4x4xf32>
    %53 = vector.broadcast %51 : vector<8x1x4xf32> to vector<8x4x4xf32>
    %54 = arith.mulf %52, %53 : vector<8x4x4xf32>
    %55 = arith.addf %47, %54 : vector<8x4x4xf32>
    %56 = vector.extract_strided_slice %13 {offsets = [0, 20], sizes = [8, 4], strides = [1, 1]} : vector<8x48xf32> to vector<8x4xf32>
    %57 = vector.extract_strided_slice %48 {offsets = [0, 0, 1], sizes = [8, 4, 1], strides = [1, 1, 1]} : vector<8x4x4xf32> to vector<8x4x1xf32>
    %58 = vector.shape_cast %56 : vector<8x4xf32> to vector<8x1x4xf32>
    %59 = vector.broadcast %57 : vector<8x4x1xf32> to vector<8x4x4xf32>
    %60 = vector.broadcast %58 : vector<8x1x4xf32> to vector<8x4x4xf32>
    %61 = arith.mulf %59, %60 : vector<8x4x4xf32>
    %62 = arith.addf %55, %61 : vector<8x4x4xf32>
    %63 = vector.extract_strided_slice %13 {offsets = [0, 24], sizes = [8, 4], strides = [1, 1]} : vector<8x48xf32> to vector<8x4xf32>
    %64 = vector.extract_strided_slice %48 {offsets = [0, 0, 2], sizes = [8, 4, 1], strides = [1, 1, 1]} : vector<8x4x4xf32> to vector<8x4x1xf32>
    %65 = vector.shape_cast %63 : vector<8x4xf32> to vector<8x1x4xf32>
    %66 = vector.broadcast %64 : vector<8x4x1xf32> to vector<8x4x4xf32>
    %67 = vector.broadcast %65 : vector<8x1x4xf32> to vector<8x4x4xf32>
    %68 = arith.mulf %66, %67 : vector<8x4x4xf32>
    %69 = arith.addf %62, %68 : vector<8x4x4xf32>
    %70 = vector.extract_strided_slice %13 {offsets = [0, 28], sizes = [8, 4], strides = [1, 1]} : vector<8x48xf32> to vector<8x4xf32>
    %71 = vector.extract_strided_slice %48 {offsets = [0, 0, 3], sizes = [8, 4, 1], strides = [1, 1, 1]} : vector<8x4x4xf32> to vector<8x4x1xf32>
    %72 = vector.shape_cast %70 : vector<8x4xf32> to vector<8x1x4xf32>
    %73 = vector.broadcast %71 : vector<8x4x1xf32> to vector<8x4x4xf32>
    %74 = vector.broadcast %72 : vector<8x1x4xf32> to vector<8x4x4xf32>
    %75 = arith.mulf %73, %74 : vector<8x4x4xf32>
    %76 = arith.addf %69, %75 : vector<8x4x4xf32>
    %77 = vector.extract_strided_slice %15 {offsets = [0, 0, 0], sizes = [8, 4, 4], strides = [1, 1, 1]} : vector<8x6x4xf32> to vector<8x4x4xf32>
    %78 = vector.extract_strided_slice %13 {offsets = [0, 32], sizes = [8, 4], strides = [1, 1]} : vector<8x48xf32> to vector<8x4xf32>
    %79 = vector.extract_strided_slice %77 {offsets = [0, 0, 0], sizes = [8, 4, 1], strides = [1, 1, 1]} : vector<8x4x4xf32> to vector<8x4x1xf32>
    %80 = vector.shape_cast %78 : vector<8x4xf32> to vector<8x1x4xf32>
    %81 = vector.broadcast %79 : vector<8x4x1xf32> to vector<8x4x4xf32>
    %82 = vector.broadcast %80 : vector<8x1x4xf32> to vector<8x4x4xf32>
    %83 = arith.mulf %81, %82 : vector<8x4x4xf32>
    %84 = arith.addf %76, %83 : vector<8x4x4xf32>
    %85 = vector.extract_strided_slice %13 {offsets = [0, 36], sizes = [8, 4], strides = [1, 1]} : vector<8x48xf32> to vector<8x4xf32>
    %86 = vector.extract_strided_slice %77 {offsets = [0, 0, 1], sizes = [8, 4, 1], strides = [1, 1, 1]} : vector<8x4x4xf32> to vector<8x4x1xf32>
    %87 = vector.shape_cast %85 : vector<8x4xf32> to vector<8x1x4xf32>
    %88 = vector.broadcast %86 : vector<8x4x1xf32> to vector<8x4x4xf32>
    %89 = vector.broadcast %87 : vector<8x1x4xf32> to vector<8x4x4xf32>
    %90 = arith.mulf %88, %89 : vector<8x4x4xf32>
    %91 = arith.addf %84, %90 : vector<8x4x4xf32>
    %92 = vector.extract_strided_slice %13 {offsets = [0, 40], sizes = [8, 4], strides = [1, 1]} : vector<8x48xf32> to vector<8x4xf32>
    %93 = vector.extract_strided_slice %77 {offsets = [0, 0, 2], sizes = [8, 4, 1], strides = [1, 1, 1]} : vector<8x4x4xf32> to vector<8x4x1xf32>
    %94 = vector.shape_cast %92 : vector<8x4xf32> to vector<8x1x4xf32>
    %95 = vector.broadcast %93 : vector<8x4x1xf32> to vector<8x4x4xf32>
    %96 = vector.broadcast %94 : vector<8x1x4xf32> to vector<8x4x4xf32>
    %97 = arith.mulf %95, %96 : vector<8x4x4xf32>
    %98 = arith.addf %91, %97 : vector<8x4x4xf32>
    %99 = vector.extract_strided_slice %13 {offsets = [0, 44], sizes = [8, 4], strides = [1, 1]} : vector<8x48xf32> to vector<8x4xf32>
    %100 = vector.extract_strided_slice %77 {offsets = [0, 0, 3], sizes = [8, 4, 1], strides = [1, 1, 1]} : vector<8x4x4xf32> to vector<8x4x1xf32>
    %101 = vector.shape_cast %99 : vector<8x4xf32> to vector<8x1x4xf32>
    %102 = vector.broadcast %100 : vector<8x4x1xf32> to vector<8x4x4xf32>
    %103 = vector.broadcast %101 : vector<8x1x4xf32> to vector<8x4x4xf32>
    %104 = arith.mulf %102, %103 : vector<8x4x4xf32>
    %105 = arith.addf %98, %104 : vector<8x4x4xf32>
    %106 = math.sin %105 : vector<8x4x4xf32>
    %107 = vector.shape_cast %106 : vector<8x4x4xf32> to vector<32x4xf32>
    %c0_14 = arith.constant 0 : index
    %c0_15 = arith.constant 0 : index
    %108 = vector.load %arg7[%c0_14, %c0_15] : memref<4x8xf32, #tpu.memory_space<vmem>>, vector<4x8xf32>
    %cst_16 = arith.constant dense<0.000000e+00> : vector<32x8xf32>
    %109 = tpu.matmul %107, %108, %cst_16 {dimension_numbers = #tpu.dot_dimension_numbers<[1], [0], [0], [1], [0, 0, 1, 1], [], []>} : vector<32x4xf32>, vector<4x8xf32>, vector<32x8xf32> -> vector<32x8xf32>
    %c0_17 = arith.constant 0 : index
    %c0_18 = arith.constant 0 : index
    %110 = vector.load %arg8[%c0_17, %c0_18] : memref<1x8xf32, #tpu.memory_space<vmem>>, vector<1x8xf32>
    %111 = vector.broadcast %110 : vector<1x8xf32> to vector<32x8xf32>
    %112 = arith.addf %109, %111 : vector<32x8xf32>
    %113 = vector.shape_cast %112 : vector<32x8xf32> to vector<8x4x8xf32>
    %114 = vector.extract_strided_slice %15 {offsets = [0, 2, 0], sizes = [8, 4, 4], strides = [1, 1, 1]} : vector<8x6x4xf32> to vector<8x4x4xf32>
    %115 = vector.extract_strided_slice %113 {offsets = [0, 0, 0], sizes = [8, 4, 4], strides = [1, 1, 1]} : vector<8x4x8xf32> to vector<8x4x4xf32>
    %116 = arith.addf %115, %114 : vector<8x4x4xf32>
    %cst_19 = arith.constant 5.000000e-01 : f32
    %117 = vector.broadcast %cst_19 : f32 to vector<8x4x4xf32>
    %118 = arith.mulf %116, %117 : vector<8x4x4xf32>
    %119 = vector.extract_strided_slice %113 {offsets = [0, 0, 4], sizes = [8, 4, 4], strides = [1, 1, 1]} : vector<8x4x8xf32> to vector<8x4x4xf32>
    %120 = tpu.concatenate %118, %119 in 2 : vector<8x4x4xf32>, vector<8x4x4xf32> -> vector<8x4x8xf32>
    %c0_20 = arith.constant 0 : index
    %c0_21 = arith.constant 0 : index
    %c0_22 = arith.constant 0 : index
    %121 = vector.load %arg9[%c0_20, %c0_21, %c0_22] : memref<8x4x8xf32, #tpu.memory_space<vmem>>, vector<8x4x8xf32>
    tpu.vector_store %arg9[%c0_20, %c0_21, %c0_22], %120 {strides = array<i32>} : memref<8x4x8xf32, #tpu.memory_space<vmem>>, vector<8x4x8xf32>,
    return
  }
  func.func @transform_0(%arg0: i32) -> (i32, i32) {
    %c0_i32 = arith.constant 0 : i32
    %c0_i32_0 = arith.constant 0 : i32
    return %arg0, %c0_i32 : i32, i32
  }
  func.func @transform_1(%arg0: i32) -> (i32, i32, i32) {
    %c0_i32 = arith.constant 0 : i32
    %c0_i32_0 = arith.constant 0 : i32
    %c0_i32_1 = arith.constant 0 : i32
    return %arg0, %c0_i32, %c0_i32_0 : i32, i32, i32
  }
  func.func @transform_2(%arg0: i32) -> (i32, i32) {
    %c0_i32 = arith.constant 0 : i32
    %c0_i32_0 = arith.constant 0 : i32
    %c0_i32_1 = arith.constant 0 : i32
    return %c0_i32, %c0_i32_0 : i32, i32
  }
  func.func @transform_3(%arg0: i32) -> (i32, i32) {
    %c0_i32 = arith.constant 0 : i32
    %c0_i32_0 = arith.constant 0 : i32
    %c0_i32_1 = arith.constant 0 : i32
    return %c0_i32, %c0_i32_0 : i32, i32
  }
  func.func @transform_4(%arg0: i32) -> (i32, i32) {
    %c0_i32 = arith.constant 0 : i32
    %c0_i32_0 = arith.constant 0 : i32
    %c0_i32_1 = arith.constant 0 : i32
    return %c0_i32, %c0_i32_0 : i32, i32
  }
  func.func @transform_5(%arg0: i32) -> (i32, i32) {
    %c0_i32 = arith.constant 0 : i32
    %c0_i32_0 = arith.constant 0 : i32
    %c0_i32_1 = arith.constant 0 : i32
    return %c0_i32, %c0_i32_0 : i32, i32
  }
  func.func @transform_6(%arg0: i32) -> (i32, i32) {
    %c0_i32 = arith.constant 0 : i32
    %c0_i32_0 = arith.constant 0 : i32
    %c0_i32_1 = arith.constant 0 : i32
    return %c0_i32, %c0_i32_0 : i32, i32
  }
  func.func @transform_7(%arg0: i32) -> (i32, i32) {
    %c0_i32 = arith.constant 0 : i32
    %c0_i32_0 = arith.constant 0 : i32
    %c0_i32_1 = arith.constant 0 : i32
    return %c0_i32, %c0_i32_0 : i32, i32
  }
  func.func @transform_8(%arg0: i32) -> (i32, i32, i32) {
    %c0_i32 = arith.constant 0 : i32
    %c0_i32_0 = arith.constant 0 : i32
    %c0_i32_1 = arith.constant 0 : i32
    return %arg0, %c0_i32, %c0_i32_0 : i32, i32, i32
  }
}

</mosaic_0001>

<llo_original>
// kernel: hyperconv_block_pallas.1
$region0: #{hyperconv_block_pallas.1}
  #allocation0 [shape = 'u32[]', space=smem, size = 0x4, offset = 0x4, fixed_abs, tag = 'smem constant byte address 0x4 - core index']
  #allocation1 [shape = 'u32[144,128]{1,0:T(1,128)}', space=vmem, size = 0x12000, scoped, tag = 'internal scratch']
  %s0 = inlined_call_operand.vmem [shape: f32[8,8], index: 0, kind: input, shape index: {}]
  %s1 = inlined_call_operand.vmem [shape: f32[8,6,4], index: 1, kind: input, shape index: {}]
  %s2 = inlined_call_operand.vmem [shape: f32[8,64], index: 2, kind: input, shape index: {}]
  %s3 = inlined_call_operand.vmem [shape: f32[1,64], index: 3, kind: input, shape index: {}]
  %s4 = inlined_call_operand.vmem [shape: f32[64,52], index: 4, kind: input, shape index: {}]
  %s5 = inlined_call_operand.vmem [shape: f32[1,52], index: 5, kind: input, shape index: {}]
  %s6 = inlined_call_operand.vmem [shape: f32[4,8], index: 6, kind: input, shape index: {}]
  %s7 = inlined_call_operand.vmem [shape: f32[1,8], index: 7, kind: input, shape index: {}]
  %s8 = inlined_call_operand.vmem [shape: f32[8,4,8], index: 8, kind: output, shape index: {}]
  %s9 = sld [smem:[#allocation0]]
  $region42: #{hyperconv_block_pallas.1} parent=0
    _
  %s11 = ssub.s32 1, %s9
  %s12 = scalar_select 0, %s11, %s9
  // Predicated region
  $region2: #{hyperconv_block_pallas.1} parent=0 // pred_check
    _
  $region3: #{hyperconv_block_pallas.1} parent=0 // pred_check_branch
    %14 = sbr.rel (0) target = $region5
  $region4: #{hyperconv_block_pallas.1} parent=0 // pred_region
    _
  $region5: #{hyperconv_block_pallas.1} parent=0 // pred_fallthru
    _
  // Predicated region
  $region6: #{hyperconv_block_pallas.1} parent=0 // pred_check
    _
  $region7: #{hyperconv_block_pallas.1} parent=0 // pred_check_branch
    %16 = sbr.rel (0) target = $region9
  $region8: #{hyperconv_block_pallas.1} parent=0 // pred_region
    _
  $region9: #{hyperconv_block_pallas.1} parent=0 // pred_fallthru
    _
  // Predicated region
  $region10: #{hyperconv_block_pallas.1} parent=0 // pred_check
    _
  $region11: #{hyperconv_block_pallas.1} parent=0 // pred_check_branch
    %18 = sbr.rel (0) target = $region13
  $region12: #{hyperconv_block_pallas.1} parent=0 // pred_region
    _
  $region13: #{hyperconv_block_pallas.1} parent=0 // pred_fallthru
    _
  // Predicated region
  $region14: #{hyperconv_block_pallas.1} parent=0 // pred_check
    _
  $region15: #{hyperconv_block_pallas.1} parent=0 // pred_check_branch
    %20 = sbr.rel (0) target = $region17
  $region16: #{hyperconv_block_pallas.1} parent=0 // pred_region
    _
  $region17: #{hyperconv_block_pallas.1} parent=0 // pred_fallthru
    _
  // Predicated region
  $region18: #{hyperconv_block_pallas.1} parent=0 // pred_check
    _
  $region19: #{hyperconv_block_pallas.1} parent=0 // pred_check_branch
    %22 = sbr.rel (0) target = $region21
  $region20: #{hyperconv_block_pallas.1} parent=0 // pred_region
    _
  $region21: #{hyperconv_block_pallas.1} parent=0 // pred_fallthru
    _
  // Predicated region
  $region22: #{hyperconv_block_pallas.1} parent=0 // pred_check
    _
  $region23: #{hyperconv_block_pallas.1} parent=0 // pred_check_branch
    %24 = sbr.rel (0) target = $region25
  $region24: #{hyperconv_block_pallas.1} parent=0 // pred_region
    _
  $region25: #{hyperconv_block_pallas.1} parent=0 // pred_fallthru
    _
  // Predicated region
  $region26: #{hyperconv_block_pallas.1} parent=0 // pred_check
    _
  $region27: #{hyperconv_block_pallas.1} parent=0 // pred_check_branch
    %26 = sbr.rel (0) target = $region29
  $region28: #{hyperconv_block_pallas.1} parent=0 // pred_region
    _
  $region29: #{hyperconv_block_pallas.1} parent=0 // pred_fallthru
    _
  // Predicated region
  $region30: #{hyperconv_block_pallas.1} parent=0 // pred_check
    _
  $region31: #{hyperconv_block_pallas.1} parent=0 // pred_check_branch
    %28 = sbr.rel (0) target = $region33
  $region32: #{hyperconv_block_pallas.1} parent=0 // pred_region
    _
  $region33: #{hyperconv_block_pallas.1} parent=0 // pred_fallthru
    _
  %v29 = vld [vmem:[%s0] sm:$0xff]
  %v30 = vld [vmem:[%s2] sm:$0xff]
  %v31 = vld [vmem:[%s3] sm:$0x1]
  %v33 = vlaneseq
  %v34 = vshrl.u32 %v33, 7
  %v35 = vsub.s32 0, %v34
  %v36 = vrot.slane %v31, %v35
  %vm38 = vcmask 64512
  %v40 = vsel %vm38, %v29, 0
  %42 = vmatprep.subr.mxu0 0.0
  %43 = vmatpush1.msra.mxu0 0.0
  %44 = vmatprep.subr.mxu0 0.0
  %45 = vmatpush1.msra.mxu0 0.0
  %46 = vmatprep.subr.mxu0 0.0
  %47 = vmatpush1.msra.mxu0 0.0
  %48 = vmatprep.subr.mxu0 0.0
  %49 = vmatpush1.msra.mxu0 0.0
  %50 = vmatprep.subr.mxu0 0.0
  %51 = vmatpush1.msra.mxu0 0.0
  %52 = vmatprep.subr.mxu0 0.0
  %53 = vmatpush1.msra.mxu0 0.0
  %54 = vmatprep.subr.mxu0 0.0
  %55 = vmatpush1.msra.mxu0 0.0
  %56 = vmatprep.subr.mxu0 0.0
  %57 = vmatpush1.msra.mxu0 0.0
  %58 = vmatprep.subr.mxu0 0.0
  %59 = vmatpush1.msra.mxu0 0.0
  %60 = vmatprep.subr.mxu0 0.0
  %61 = vmatpush1.msra.mxu0 0.0
  %62 = vmatprep.subr.mxu0 0.0
  %63 = vmatpush1.msra.mxu0 0.0
  %64 = vmatprep.subr.mxu0 0.0
  %65 = vmatpush1.msra.mxu0 0.0
  %66 = vmatprep.subr.mxu0 0.0
  %67 = vmatpush1.msra.mxu0 0.0
  %68 = vmatprep.subr.mxu0 0.0
  %69 = vmatpush1.msra.mxu0 0.0
  %70 = vmatprep.subr.mxu0 0.0
  %71 = vmatpush1.msra.mxu0 0.0
  %72 = vmatprep.subr.mxu0 0.0
  %73 = vmatpush1.msra.mxu0 %v30
  %74 = vmatprep.subr.mxu0 0.0
  %75 = vmatpush2.msra.mxu0 0.0
  %76 = vmatprep.subr.mxu0 0.0
  %77 = vmatpush2.msra.mxu0 0.0
  %78 = vmatprep.subr.mxu0 0.0
  %79 = vmatpush2.msra.mxu0 0.0
  %80 = vmatprep.subr.mxu0 0.0
  %81 = vmatpush2.msra.mxu0 0.0
  %82 = vmatprep.subr.mxu0 0.0
  %83 = vmatpush2.msra.mxu0 0.0
  %84 = vmatprep.subr.mxu0 0.0
  %85 = vmatpush2.msra.mxu0 0.0
  %86 = vmatprep.subr.mxu0 0.0
  %87 = vmatpush2.msra.mxu0 0.0
  %88 = vmatprep.subr.mxu0 0.0
  %89 = vmatpush2.msra.mxu0 0.0
  %90 = vmatprep.subr.mxu0 0.0
  %91 = vmatpush2.msra.mxu0 0.0
  %92 = vmatprep.subr.mxu0 0.0
  %93 = vmatpush2.msra.mxu0 0.0
  %94 = vmatprep.subr.mxu0 0.0
  %95 = vmatpush2.msra.mxu0 0.0
  %96 = vmatprep.subr.mxu0 0.0
  %97 = vmatpush2.msra.mxu0 0.0
  %98 = vmatprep.subr.mxu0 0.0
  %99 = vmatpush2.msra.mxu0 0.0
  %100 = vmatprep.subr.mxu0 0.0
  %101 = vmatpush2.msra.mxu0 0.0
  %102 = vmatprep.subr.mxu0 0.0
  %103 = vmatpush2.msra.mxu0 0.0
  %104 = vmatprep.subr.mxu0 0.0
  %105 = vmatpush2.msra.mxu0 0.0
  %106 = vmatprep.mubr.f32.mxu0 0.0
  %107 = vmatmul.mubr.f32.gmra.mxu0 %v40
  %v108 = vpop.f32.mrf.mxu0
  %v109 = vadd.f32 %v36, %v108
  %v110 = vpop.f32.mrf.mxu0
  %111 = vdwg.mxu0
  %v112 = vmax.f32 %v109, 0.0
  %v113 = vld [vmem:[%s4] sm:$0xff]
  %v114 = vld [vmem:[%s4 + $0x8] sm:$0xff]
  %v115 = vld [vmem:[%s4 + $0x10] sm:$0xff]
  %v116 = vld [vmem:[%s4 + $0x18] sm:$0xff]
  %v117 = vld [vmem:[%s4 + $0x20] sm:$0xff]
  %v118 = vld [vmem:[%s4 + $0x28] sm:$0xff]
  %v119 = vld [vmem:[%s4 + $0x30] sm:$0xff]
  %v120 = vld [vmem:[%s4 + $0x38] sm:$0xff]
  %v121 = vld [vmem:[%s5] sm:$0x1]
  %v123 = vlaneseq
  %v124 = vshrl.u32 %v123, 7
  %v125 = vsub.s32 0, %v124
  %v126 = vrot.slane %v121, %v125
  %vm128 = vcmask 523264
  %v130 = vsel %vm128, %v112, 0
  %132 = vmatprep.subr.mxu0 0.0
  %133 = vmatpush1.msra.mxu0 0.0
  %134 = vmatprep.subr.mxu0 0.0
  %135 = vmatpush1.msra.mxu0 0.0
  %136 = vmatprep.subr.mxu0 0.0
  %137 = vmatpush1.msra.mxu0 0.0
  %138 = vmatprep.subr.mxu0 0.0
  %139 = vmatpush1.msra.mxu0 0.0
  %140 = vmatprep.subr.mxu0 0.0
  %141 = vmatpush1.msra.mxu0 0.0
  %142 = vmatprep.subr.mxu0 0.0
  %143 = vmatpush1.msra.mxu0 0.0
  %144 = vmatprep.subr.mxu0 0.0
  %145 = vmatpush1.msra.mxu0 0.0
  %146 = vmatprep.subr.mxu0 0.0
  %147 = vmatpush1.msra.mxu0 0.0
  %148 = vmatprep.subr.mxu0 0.0
  %149 = vmatpush1.msra.mxu0 %v120
  %150 = vmatprep.subr.mxu0 0.0
  %151 = vmatpush1.msra.mxu0 %v119
  %152 = vmatprep.subr.mxu0 0.0
  %153 = vmatpush1.msra.mxu0 %v118
  %154 = vmatprep.subr.mxu0 0.0
  %155 = vmatpush1.msra.mxu0 %v117
  %156 = vmatprep.subr.mxu0 0.0
  %157 = vmatpush1.msra.mxu0 %v116
  %158 = vmatprep.subr.mxu0 0.0
  %159 = vmatpush1.msra.mxu0 %v115
  %160 = vmatprep.subr.mxu0 0.0
  %161 = vmatpush1.msra.mxu0 %v114
  %162 = vmatprep.subr.mxu0 0.0
  %163 = vmatpush1.msra.mxu0 %v113
  %164 = vmatprep.subr.mxu0 0.0
  %165 = vmatpush2.msra.mxu0 0.0
  %166 = vmatprep.subr.mxu0 0.0
  %167 = vmatpush2.msra.mxu0 0.0
  %168 = vmatprep.subr.mxu0 0.0
  %169 = vmatpush2.msra.mxu0 0.0
  %170 = vmatprep.subr.mxu0 0.0
  %171 = vmatpush2.msra.mxu0 0.0
  %172 = vmatprep.subr.mxu0 0.0
  %173 = vmatpush2.msra.mxu0 0.0
  %174 = vmatprep.subr.mxu0 0.0
  %175 = vmatpush2.msra.mxu0 0.0
  %176 = vmatprep.subr.mxu0 0.0
  %177 = vmatpush2.msra.mxu0 0.0
  %178 = vmatprep.subr.mxu0 0.0
  %179 = vmatpush2.msra.mxu0 0.0
  %180 = vmatprep.subr.mxu0 0.0
  %181 = vmatpush2.msra.mxu0 0.0
  %182 = vmatprep.subr.mxu0 0.0
  %183 = vmatpush2.msra.mxu0 0.0
  %184 = vmatprep.subr.mxu0 0.0
  %185 = vmatpush2.msra.mxu0 0.0
  %186 = vmatprep.subr.mxu0 0.0
  %187 = vmatpush2.msra.mxu0 0.0
  %188 = vmatprep.subr.mxu0 0.0
  %189 = vmatpush2.msra.mxu0 0.0
  %190 = vmatprep.subr.mxu0 0.0
  %191 = vmatpush2.msra.mxu0 0.0
  %192 = vmatprep.subr.mxu0 0.0
  %193 = vmatpush2.msra.mxu0 0.0
  %194 = vmatprep.subr.mxu0 0.0
  %195 = vmatpush2.msra.mxu0 0.0
  %196 = vmatprep.mubr.f32.mxu0 0.0
  %197 = vmatmul.mubr.f32.gmra.mxu0 %v130
  %v198 = vpop.f32.mrf.mxu0
  %v199 = vadd.f32 %v126, %v198
  %v200 = vpop.f32.mrf.mxu0
  %201 = vdwg.mxu0
  %v202 = vld [vmem:[%s1] sm:$0x3f]
  %v203 = vld [vmem:[%s1 + $0x8] sm:$0x3f]
  %v204 = vld [vmem:[%s1 + $0x10] sm:$0x3f]
  %v205 = vld [vmem:[%s1 + $0x18] sm:$0x3f]
  %v206 = vld [vmem:[%s1 + $0x20] sm:$0x3f]
  %v207 = vld [vmem:[%s1 + $0x28] sm:$0x3f]
  %v208 = vld [vmem:[%s1 + $0x30] sm:$0x3f]
  %v209 = vld [vmem:[%s1 + $0x38] sm:$0x3f]
  %v211 = vcombine.high %v199, %v199
  %v213 = vunpack.c.l.s4 1966171168
  %v214 = vunpack.c.0.s8 %v213
  %v215 = vlaneseq
  %v216 = vshrl.u32 %v215, 7
  %v217 = vsub.s32 %v214, %v216
  %v218 = vrot.slane %v199, %v217
  %v220 = vunpack.c.l.s4 1966171168
  %v221 = vunpack.c.0.s8 %v220
  %v222 = vlaneseq
  %v223 = vshrl.u32 %v222, 7
  %v224 = vsub.s32 %v221, %v223
  %v225 = vrot.slane %v211, %v224
  %v226 = vcombine.high %v218, %v218
  %v227 = vcombine.high %v225, %v225
  %v229 = vunpack.c.l.s4 1966171168
  %v230 = vunpack.c.0.s8 %v229
  %v231 = vlaneseq
  %v232 = vshrl.u32 %v231, 7
  %v233 = vsub.s32 %v230, %v232
  %v234 = vrot.slane %v218, %v233
  %v236 = vunpack.c.l.s4 1966171168
  %v237 = vunpack.c.0.s8 %v236
  %v238 = vlaneseq
  %v239 = vshrl.u32 %v238, 7
  %v240 = vsub.s32 %v237, %v239
  %v241 = vrot.slane %v225, %v240
  %v243 = vunpack.c.l.s4 1966171168
  %v244 = vunpack.c.0.s8 %v243
  %v245 = vlaneseq
  %v246 = vshrl.u32 %v245, 7
  %v247 = vsub.s32 %v244, %v246
  %v248 = vrot.slane %v226, %v247
  %v250 = vunpack.c.l.s4 1966171168
  %v251 = vunpack.c.0.s8 %v250
  %v252 = vlaneseq
  %v253 = vshrl.u32 %v252, 7
  %v254 = vsub.s32 %v251, %v253
  %v255 = vrot.slane %v227, %v254
  %v256 = vcombine.high %v234, %v234
  %v257 = vcombine.high %v241, %v241
  %v258 = vcombine.high %v248, %v248
  %v259 = vcombine.high %v255, %v255
  %v260 = vlaneseq
  %v261 = vshrl.u32 %v260, 7
  %v262 = vsub.s32 0, %v261
  %v263 = vrot.slane %v234, %v262
  %v264 = vlaneseq
  %v265 = vshrl.u32 %v264, 7
  %v266 = vsub.s32 0, %v265
  %v267 = vrot.slane %v248, %v266
  %v268 = vlaneseq
  %v269 = vshrl.u32 %v268, 7
  %v270 = vsub.s32 0, %v269
  %v271 = vrot.slane %v256, %v270
  %v272 = vlaneseq
  %v273 = vshrl.u32 %v272, 7
  %v274 = vsub.s32 0, %v273
  %v275 = vrot.slane %v258, %v274
  %v276 = vlaneseq
  %v277 = vshrl.u32 %v276, 7
  %v278 = vsub.s32 0, %v277
  %v279 = vrot.slane %v241, %v278
  %v280 = vlaneseq
  %v281 = vshrl.u32 %v280, 7
  %v282 = vsub.s32 0, %v281
  %v283 = vrot.slane %v255, %v282
  %v284 = vlaneseq
  %v285 = vshrl.u32 %v284, 7
  %v286 = vsub.s32 0, %v285
  %v287 = vrot.slane %v257, %v286
  %v288 = vlaneseq
  %v289 = vshrl.u32 %v288, 7
  %v290 = vsub.s32 0, %v289
  %v291 = vrot.slane %v259, %v290
  %301 = vset.pattern.permute.xlu0 0
  %302 = vperm.xlu0 %301, %v202
  %v303 = vpop.permute.xlu0 %302
  %306 = vset.pattern.permute.xlu0 0
  %307 = vperm.xlu0 %306, %v203
  %v308 = vpop.permute.xlu0 %307
  %311 = vset.pattern.permute.xlu0 0
  %312 = vperm.xlu0 %311, %v204
  %v313 = vpop.permute.xlu0 %312
  %316 = vset.pattern.permute.xlu0 0
  %317 = vperm.xlu0 %316, %v205
  %v318 = vpop.permute.xlu0 %317
  %321 = vset.pattern.permute.xlu0 0
  %322 = vperm.xlu0 %321, %v206
  %v323 = vpop.permute.xlu0 %322
  %326 = vset.pattern.permute.xlu0 0
  %327 = vperm.xlu0 %326, %v207
  %v328 = vpop.permute.xlu0 %327
  %331 = vset.pattern.permute.xlu0 0
  %332 = vperm.xlu0 %331, %v208
  %v333 = vpop.permute.xlu0 %332
  %336 = vset.pattern.permute.xlu0 0
  %337 = vperm.xlu0 %336, %v209
  %v338 = vpop.permute.xlu0 %337
  %v340 = vmul.f32 %v303, %v263
  %v341 = vmul.f32 %v308, %v267
  %v342 = vmul.f32 %v313, %v271
  %v343 = vmul.f32 %v318, %v275
  %v344 = vmul.f32 %v323, %v279
  %v345 = vmul.f32 %v328, %v283
  %v346 = vmul.f32 %v333, %v287
  %v347 = vmul.f32 %v338, %v291
  %v356 = vrot.slane %v340, 2
  %v357 = vrot.slane %v341, 2
  %v358 = vrot.slane %v342, 2
  %v359 = vrot.slane %v343, 2
  %v360 = vrot.slane %v344, 2
  %v361 = vrot.slane %v345, 2
  %v362 = vrot.slane %v346, 2
  %v363 = vrot.slane %v347, 2
  %364 = vrot.lane.b32.xlu0 %v356, 48
  %v365 = vpop.permute.xlu0 %364
  %366 = vrot.lane.b32.xlu0 %v357, 48
  %v367 = vpop.permute.xlu0 %366
  %368 = vrot.lane.b32.xlu0 %v358, 48
  %v369 = vpop.permute.xlu0 %368
  %370 = vrot.lane.b32.xlu0 %v359, 48
  %v371 = vpop.permute.xlu0 %370
  %372 = vrot.lane.b32.xlu0 %v360, 48
  %v373 = vpop.permute.xlu0 %372
  %374 = vrot.lane.b32.xlu0 %v361, 48
  %v375 = vpop.permute.xlu0 %374
  %376 = vrot.lane.b32.xlu0 %v362, 48
  %v377 = vpop.permute.xlu0 %376
  %378 = vrot.lane.b32.xlu0 %v363, 48
  %v379 = vpop.permute.xlu0 %378
  %v388 = vadd.f32 %v263, %v365
  %v389 = vadd.f32 %v267, %v367
  %v390 = vadd.f32 %v271, %v369
  %v391 = vadd.f32 %v275, %v371
  %v392 = vadd.f32 %v279, %v373
  %v393 = vadd.f32 %v283, %v375
  %v394 = vadd.f32 %v287, %v377
  %v395 = vadd.f32 %v291, %v379
  %396 = vset.pattern.permute.xlu0 1
  %397 = vperm.xlu0 %396, %v202
  %v398 = vpop.permute.xlu0 %397
  %400 = vset.pattern.permute.xlu0 1
  %401 = vperm.xlu0 %400, %v203
  %v402 = vpop.permute.xlu0 %401
  %404 = vset.pattern.permute.xlu0 1
  %405 = vperm.xlu0 %404, %v204
  %v406 = vpop.permute.xlu0 %405
  %408 = vset.pattern.permute.xlu0 1
  %409 = vperm.xlu0 %408, %v205
  %v410 = vpop.permute.xlu0 %409
  %412 = vset.pattern.permute.xlu0 1
  %413 = vperm.xlu0 %412, %v206
  %v414 = vpop.permute.xlu0 %413
  %416 = vset.pattern.permute.xlu0 1
  %417 = vperm.xlu0 %416, %v207
  %v418 = vpop.permute.xlu0 %417
  %420 = vset.pattern.permute.xlu0 1
  %421 = vperm.xlu0 %420, %v208
  %v422 = vpop.permute.xlu0 %421
  %424 = vset.pattern.permute.xlu0 1
  %425 = vperm.xlu0 %424, %v209
  %v426 = vpop.permute.xlu0 %425
  %v428 = vmul.f32 %v398, %v263
  %v429 = vmul.f32 %v402, %v267
  %v430 = vmul.f32 %v406, %v271
  %v431 = vmul.f32 %v410, %v275
  %v432 = vmul.f32 %v414, %v279
  %v433 = vmul.f32 %v418, %v283
  %v434 = vmul.f32 %v422, %v287
  %v435 = vmul.f32 %v426, %v291
  %v444 = vrot.slane %v428, 2
  %v445 = vrot.slane %v429, 2
  %v446 = vrot.slane %v430, 2
  %v447 = vrot.slane %v431, 2
  %v448 = vrot.slane %v432, 2
  %v449 = vrot.slane %v433, 2
  %v450 = vrot.slane %v434, 2
  %v451 = vrot.slane %v435, 2
  %452 = vrot.lane.b32.xlu0 %v444, 44
  %v453 = vpop.permute.xlu0 %452
  %454 = vrot.lane.b32.xlu0 %v445, 44
  %v455 = vpop.permute.xlu0 %454
  %456 = vrot.lane.b32.xlu0 %v446, 44
  %v457 = vpop.permute.xlu0 %456
  %458 = vrot.lane.b32.xlu0 %v447, 44
  %v459 = vpop.permute.xlu0 %458
  %460 = vrot.lane.b32.xlu0 %v448, 44
  %v461 = vpop.permute.xlu0 %460
  %462 = vrot.lane.b32.xlu0 %v449, 44
  %v463 = vpop.permute.xlu0 %462
  %464 = vrot.lane.b32.xlu0 %v450, 44
  %v465 = vpop.permute.xlu0 %464
  %466 = vrot.lane.b32.xlu0 %v451, 44
  %v467 = vpop.permute.xlu0 %466
  %v476 = vadd.f32 %v388, %v453
  %v477 = vadd.f32 %v389, %v455
  %v478 = vadd.f32 %v390, %v457
  %v479 = vadd.f32 %v391, %v459
  %v480 = vadd.f32 %v392, %v461
  %v481 = vadd.f32 %v393, %v463
  %v482 = vadd.f32 %v394, %v465
  %v483 = vadd.f32 %v395, %v467
  %484 = vset.pattern.permute.xlu0 2
  %485 = vperm.xlu0 %484, %v202
  %v486 = vpop.permute.xlu0 %485
  %488 = vset.pattern.permute.xlu0 2
  %489 = vperm.xlu0 %488, %v203
  %v490 = vpop.permute.xlu0 %489
  %492 = vset.pattern.permute.xlu0 2
  %493 = vperm.xlu0 %492, %v204
  %v494 = vpop.permute.xlu0 %493
  %496 = vset.pattern.permute.xlu0 2
  %497 = vperm.xlu0 %496, %v205
  %v498 = vpop.permute.xlu0 %497
  %500 = vset.pattern.permute.xlu0 2
  %501 = vperm.xlu0 %500, %v206
  %v502 = vpop.permute.xlu0 %501
  %504 = vset.pattern.permute.xlu0 2
  %505 = vperm.xlu0 %504, %v207
  %v506 = vpop.permute.xlu0 %505
  %508 = vset.pattern.permute.xlu0 2
  %509 = vperm.xlu0 %508, %v208
  %v510 = vpop.permute.xlu0 %509
  %512 = vset.pattern.permute.xlu0 2
  %513 = vperm.xlu0 %512, %v209
  %v514 = vpop.permute.xlu0 %513
  %v516 = vmul.f32 %v486, %v263
  %v517 = vmul.f32 %v490, %v267
  %v518 = vmul.f32 %v494, %v271
  %v519 = vmul.f32 %v498, %v275
  %v520 = vmul.f32 %v502, %v279
  %v521 = vmul.f32 %v506, %v283
  %v522 = vmul.f32 %v510, %v287
  %v523 = vmul.f32 %v514, %v291
  %v532 = vrot.slane %v516, 2
  %v533 = vrot.slane %v517, 2
  %v534 = vrot.slane %v518, 2
  %v535 = vrot.slane %v519, 2
  %v536 = vrot.slane %v520, 2
  %v537 = vrot.slane %v521, 2
  %v538 = vrot.slane %v522, 2
  %v539 = vrot.slane %v523, 2
  %540 = vrot.lane.b32.xlu0 %v532, 40
  %v541 = vpop.permute.xlu0 %540
  %542 = vrot.lane.b32.xlu0 %v533, 40
  %v543 = vpop.permute.xlu0 %542
  %544 = vrot.lane.b32.xlu0 %v534, 40
  %v545 = vpop.permute.xlu0 %544
  %546 = vrot.lane.b32.xlu0 %v535, 40
  %v547 = vpop.permute.xlu0 %546
  %548 = vrot.lane.b32.xlu0 %v536, 40
  %v549 = vpop.permute.xlu0 %548
  %550 = vrot.lane.b32.xlu0 %v537, 40
  %v551 = vpop.permute.xlu0 %550
  %552 = vrot.lane.b32.xlu0 %v538, 40
  %v553 = vpop.permute.xlu0 %552
  %554 = vrot.lane.b32.xlu0 %v539, 40
  %v555 = vpop.permute.xlu0 %554
  %v564 = vadd.f32 %v476, %v541
  %v565 = vadd.f32 %v477, %v543
  %v566 = vadd.f32 %v478, %v545
  %v567 = vadd.f32 %v479, %v547
  %v568 = vadd.f32 %v480, %v549
  %v569 = vadd.f32 %v481, %v551
  %v570 = vadd.f32 %v482, %v553
  %v571 = vadd.f32 %v483, %v555
  %572 = vset.pattern.permute.xlu0 3
  %573 = vperm.xlu0 %572, %v202
  %v574 = vpop.permute.xlu0 %573
  %576 = vset.pattern.permute.xlu0 3
  %577 = vperm.xlu0 %576, %v203
  %v578 = vpop.permute.xlu0 %577
  %580 = vset.pattern.permute.xlu0 3
  %581 = vperm.xlu0 %580, %v204
  %v582 = vpop.permute.xlu0 %581
  %584 = vset.pattern.permute.xlu0 3
  %585 = vperm.xlu0 %584, %v205
  %v586 = vpop.permute.xlu0 %585
  %588 = vset.pattern.permute.xlu0 3
  %589 = vperm.xlu0 %588, %v206
  %v590 = vpop.permute.xlu0 %589
  %592 = vset.pattern.permute.xlu0 3
  %593 = vperm.xlu0 %592, %v207
  %v594 = vpop.permute.xlu0 %593
  %596 = vset.pattern.permute.xlu0 3
  %597 = vperm.xlu0 %596, %v208
  %v598 = vpop.permute.xlu0 %597
  %600 = vset.pattern.permute.xlu0 3
  %601 = vperm.xlu0 %600, %v209
  %v602 = vpop.permute.xlu0 %601
  %v604 = vmul.f32 %v574, %v263
  %v605 = vmul.f32 %v578, %v267
  %v606 = vmul.f32 %v582, %v271
  %v607 = vmul.f32 %v586, %v275
  %v608 = vmul.f32 %v590, %v279
  %v609 = vmul.f32 %v594, %v283
  %v610 = vmul.f32 %v598, %v287
  %v611 = vmul.f32 %v602, %v291
  %v620 = vrot.slane %v604, 2
  %v621 = vrot.slane %v605, 2
  %v622 = vrot.slane %v606, 2
  %v623 = vrot.slane %v607, 2
  %v624 = vrot.slane %v608, 2
  %v625 = vrot.slane %v609, 2
  %v626 = vrot.slane %v610, 2
  %v627 = vrot.slane %v611, 2
  %628 = vrot.lane.b32.xlu0 %v620, 36
  %v629 = vpop.permute.xlu0 %628
  %630 = vrot.lane.b32.xlu0 %v621, 36
  %v631 = vpop.permute.xlu0 %630
  %632 = vrot.lane.b32.xlu0 %v622, 36
  %v633 = vpop.permute.xlu0 %632
  %634 = vrot.lane.b32.xlu0 %v623, 36
  %v635 = vpop.permute.xlu0 %634
  %636 = vrot.lane.b32.xlu0 %v624, 36
  %v637 = vpop.permute.xlu0 %636
  %638 = vrot.lane.b32.xlu0 %v625, 36
  %v639 = vpop.permute.xlu0 %638
  %640 = vrot.lane.b32.xlu0 %v626, 36
  %v641 = vpop.permute.xlu0 %640
  %642 = vrot.lane.b32.xlu0 %v627, 36
  %v643 = vpop.permute.xlu0 %642
  %v652 = vadd.f32 %v564, %v629
  %v653 = vadd.f32 %v565, %v631
  %v654 = vadd.f32 %v566, %v633
  %v655 = vadd.f32 %v567, %v635
  %v656 = vadd.f32 %v568, %v637
  %v657 = vadd.f32 %v569, %v639
  %v658 = vadd.f32 %v570, %v641
  %v659 = vadd.f32 %v571, %v643
  %v660 = vrot.slane %v340, 1
  %v661 = vrot.slane %v341, 1
  %v662 = vrot.slane %v342, 1
  %v663 = vrot.slane %v343, 1
  %v664 = vrot.slane %v344, 1
  %v665 = vrot.slane %v345, 1
  %v666 = vrot.slane %v346, 1
  %v667 = vrot.slane %v347, 1
  %668 = vrot.lane.b32.xlu0 %v660, 32
  %v669 = vpop.permute.xlu0 %668
  %670 = vrot.lane.b32.xlu0 %v661, 32
  %v671 = vpop.permute.xlu0 %670
  %672 = vrot.lane.b32.xlu0 %v662, 32
  %v673 = vpop.permute.xlu0 %672
  %674 = vrot.lane.b32.xlu0 %v663, 32
  %v675 = vpop.permute.xlu0 %674
  %676 = vrot.lane.b32.xlu0 %v664, 32
  %v677 = vpop.permute.xlu0 %676
  %678 = vrot.lane.b32.xlu0 %v665, 32
  %v679 = vpop.permute.xlu0 %678
  %680 = vrot.lane.b32.xlu0 %v666, 32
  %v681 = vpop.permute.xlu0 %680
  %682 = vrot.lane.b32.xlu0 %v667, 32
  %v683 = vpop.permute.xlu0 %682
  %v692 = vadd.f32 %v652, %v669
  %v693 = vadd.f32 %v653, %v671
  %v694 = vadd.f32 %v654, %v673
  %v695 = vadd.f32 %v655, %v675
  %v696 = vadd.f32 %v656, %v677
  %v697 = vadd.f32 %v657, %v679
  %v698 = vadd.f32 %v658, %v681
  %v699 = vadd.f32 %v659, %v683
  %v700 = vrot.slane %v428, 1
  %v701 = vrot.slane %v429, 1
  %v702 = vrot.slane %v430, 1
  %v703 = vrot.slane %v431, 1
  %v704 = vrot.slane %v432, 1
  %v705 = vrot.slane %v433, 1
  %v706 = vrot.slane %v434, 1
  %v707 = vrot.slane %v435, 1
  %708 = vrot.lane.b32.xlu0 %v700, 28
  %v709 = vpop.permute.xlu0 %708
  %710 = vrot.lane.b32.xlu0 %v701, 28
  %v711 = vpop.permute.xlu0 %710
  %712 = vrot.lane.b32.xlu0 %v702, 28
  %v713 = vpop.permute.xlu0 %712
  %714 = vrot.lane.b32.xlu0 %v703, 28
  %v715 = vpop.permute.xlu0 %714
  %716 = vrot.lane.b32.xlu0 %v704, 28
  %v717 = vpop.permute.xlu0 %716
  %718 = vrot.lane.b32.xlu0 %v705, 28
  %v719 = vpop.permute.xlu0 %718
  %720 = vrot.lane.b32.xlu0 %v706, 28
  %v721 = vpop.permute.xlu0 %720
  %722 = vrot.lane.b32.xlu0 %v707, 28
  %v723 = vpop.permute.xlu0 %722
  %v732 = vadd.f32 %v692, %v709
  %v733 = vadd.f32 %v693, %v711
  %v734 = vadd.f32 %v694, %v713
  %v735 = vadd.f32 %v695, %v715
  %v736 = vadd.f32 %v696, %v717
  %v737 = vadd.f32 %v697, %v719
  %v738 = vadd.f32 %v698, %v721
  %v739 = vadd.f32 %v699, %v723
  %v740 = vrot.slane %v516, 1
  %v741 = vrot.slane %v517, 1
  %v742 = vrot.slane %v518, 1
  %v743 = vrot.slane %v519, 1
  %v744 = vrot.slane %v520, 1
  %v745 = vrot.slane %v521, 1
  %v746 = vrot.slane %v522, 1
  %v747 = vrot.slane %v523, 1
  %748 = vrot.lane.b32.xlu0 %v740, 24
  %v749 = vpop.permute.xlu0 %748
  %750 = vrot.lane.b32.xlu0 %v741, 24
  %v751 = vpop.permute.xlu0 %750
  %752 = vrot.lane.b32.xlu0 %v742, 24
  %v753 = vpop.permute.xlu0 %752
  %754 = vrot.lane.b32.xlu0 %v743, 24
  %v755 = vpop.permute.xlu0 %754
  %756 = vrot.lane.b32.xlu0 %v744, 24
  %v757 = vpop.permute.xlu0 %756
  %758 = vrot.lane.b32.xlu0 %v745, 24
  %v759 = vpop.permute.xlu0 %758
  %760 = vrot.lane.b32.xlu0 %v746, 24
  %v761 = vpop.permute.xlu0 %760
  %762 = vrot.lane.b32.xlu0 %v747, 24
  %v763 = vpop.permute.xlu0 %762
  %v772 = vadd.f32 %v732, %v749
  %v773 = vadd.f32 %v733, %v751
  %v774 = vadd.f32 %v734, %v753
  %v775 = vadd.f32 %v735, %v755
  %v776 = vadd.f32 %v736, %v757
  %v777 = vadd.f32 %v737, %v759
  %v778 = vadd.f32 %v738, %v761
  %v779 = vadd.f32 %v739, %v763
  %v780 = vrot.slane %v604, 1
  %v781 = vrot.slane %v605, 1
  %v782 = vrot.slane %v606, 1
  %v783 = vrot.slane %v607, 1
  %v784 = vrot.slane %v608, 1
  %v785 = vrot.slane %v609, 1
  %v786 = vrot.slane %v610, 1
  %v787 = vrot.slane %v611, 1
  %788 = vrot.lane.b32.xlu0 %v780, 20
  %v789 = vpop.permute.xlu0 %788
  %790 = vrot.lane.b32.xlu0 %v781, 20
  %v791 = vpop.permute.xlu0 %790
  %792 = vrot.lane.b32.xlu0 %v782, 20
  %v793 = vpop.permute.xlu0 %792
  %794 = vrot.lane.b32.xlu0 %v783, 20
  %v795 = vpop.permute.xlu0 %794
  %796 = vrot.lane.b32.xlu0 %v784, 20
  %v797 = vpop.permute.xlu0 %796
  %798 = vrot.lane.b32.xlu0 %v785, 20
  %v799 = vpop.permute.xlu0 %798
  %800 = vrot.lane.b32.xlu0 %v786, 20
  %v801 = vpop.permute.xlu0 %800
  %802 = vrot.lane.b32.xlu0 %v787, 20
  %v803 = vpop.permute.xlu0 %802
  %v812 = vadd.f32 %v772, %v789
  %v813 = vadd.f32 %v773, %v791
  %v814 = vadd.f32 %v774, %v793
  %v815 = vadd.f32 %v775, %v795
  %v816 = vadd.f32 %v776, %v797
  %v817 = vadd.f32 %v777, %v799
  %v818 = vadd.f32 %v778, %v801
  %v819 = vadd.f32 %v779, %v803
  %820 = vrot.lane.b32.xlu0 %v340, 16
  %v821 = vpop.permute.xlu0 %820
  %822 = vrot.lane.b32.xlu0 %v341, 16
  %v823 = vpop.permute.xlu0 %822
  %824 = vrot.lane.b32.xlu0 %v342, 16
  %v825 = vpop.permute.xlu0 %824
  %826 = vrot.lane.b32.xlu0 %v343, 16
  %v827 = vpop.permute.xlu0 %826
  %828 = vrot.lane.b32.xlu0 %v344, 16
  %v829 = vpop.permute.xlu0 %828
  %830 = vrot.lane.b32.xlu0 %v345, 16
  %v831 = vpop.permute.xlu0 %830
  %832 = vrot.lane.b32.xlu0 %v346, 16
  %v833 = vpop.permute.xlu0 %832
  %834 = vrot.lane.b32.xlu0 %v347, 16
  %v835 = vpop.permute.xlu0 %834
  %v844 = vadd.f32 %v812, %v821
  %v845 = vadd.f32 %v813, %v823
  %v846 = vadd.f32 %v814, %v825
  %v847 = vadd.f32 %v815, %v827
  %v848 = vadd.f32 %v816, %v829
  %v849 = vadd.f32 %v817, %v831
  %v850 = vadd.f32 %v818, %v833
  %v851 = vadd.f32 %v819, %v835
  %852 = vrot.lane.b32.xlu0 %v428, 12
  %v853 = vpop.permute.xlu0 %852
  %854 = vrot.lane.b32.xlu0 %v429, 12
  %v855 = vpop.permute.xlu0 %854
  %856 = vrot.lane.b32.xlu0 %v430, 12
  %v857 = vpop.permute.xlu0 %856
  %858 = vrot.lane.b32.xlu0 %v431, 12
  %v859 = vpop.permute.xlu0 %858
  %860 = vrot.lane.b32.xlu0 %v432, 12
  %v861 = vpop.permute.xlu0 %860
  %862 = vrot.lane.b32.xlu0 %v433, 12
  %v863 = vpop.permute.xlu0 %862
  %864 = vrot.lane.b32.xlu0 %v434, 12
  %v865 = vpop.permute.xlu0 %864
  %866 = vrot.lane.b32.xlu0 %v435, 12
  %v867 = vpop.permute.xlu0 %866
  %v876 = vadd.f32 %v844, %v853
  %v877 = vadd.f32 %v845, %v855
  %v878 = vadd.f32 %v846, %v857
  %v879 = vadd.f32 %v847, %v859
  %v880 = vadd.f32 %v848, %v861
  %v881 = vadd.f32 %v849, %v863
  %v882 = vadd.f32 %v850, %v865
  %v883 = vadd.f32 %v851, %v867
  %884 = vrot.lane.b32.xlu0 %v516, 8
  %v885 = vpop.permute.xlu0 %884
  %886 = vrot.lane.b32.xlu0 %v517, 8
  %v887 = vpop.permute.xlu0 %886
  %888 = vrot.lane.b32.xlu0 %v518, 8
  %v889 = vpop.permute.xlu0 %888
  %890 = vrot.lane.b32.xlu0 %v519, 8
  %v891 = vpop.permute.xlu0 %890
  %892 = vrot.lane.b32.xlu0 %v520, 8
  %v893 = vpop.permute.xlu0 %892
  %894 = vrot.lane.b32.xlu0 %v521, 8
  %v895 = vpop.permute.xlu0 %894
  %896 = vrot.lane.b32.xlu0 %v522, 8
  %v897 = vpop.permute.xlu0 %896
  %898 = vrot.lane.b32.xlu0 %v523, 8
  %v899 = vpop.permute.xlu0 %898
  %v908 = vadd.f32 %v876, %v885
  %v909 = vadd.f32 %v877, %v887
  %v910 = vadd.f32 %v878, %v889
  %v911 = vadd.f32 %v879, %v891
  %v912 = vadd.f32 %v880, %v893
  %v913 = vadd.f32 %v881, %v895
  %v914 = vadd.f32 %v882, %v897
  %v915 = vadd.f32 %v883, %v899
  %916 = vrot.lane.b32.xlu0 %v604, 4
  %v917 = vpop.permute.xlu0 %916
  %918 = vrot.lane.b32.xlu0 %v605, 4
  %v919 = vpop.permute.xlu0 %918
  %920 = vrot.lane.b32.xlu0 %v606, 4
  %v921 = vpop.permute.xlu0 %920
  %922 = vrot.lane.b32.xlu0 %v607, 4
  %v923 = vpop.permute.xlu0 %922
  %924 = vrot.lane.b32.xlu0 %v608, 4
  %v925 = vpop.permute.xlu0 %924
  %926 = vrot.lane.b32.xlu0 %v609, 4
  %v927 = vpop.permute.xlu0 %926
  %928 = vrot.lane.b32.xlu0 %v610, 4
  %v929 = vpop.permute.xlu0 %928
  %930 = vrot.lane.b32.xlu0 %v611, 4
  %v931 = vpop.permute.xlu0 %930
  %v940 = vadd.f32 %v908, %v917
  %v941 = vadd.f32 %v909, %v919
  %v942 = vadd.f32 %v910, %v921
  %v943 = vadd.f32 %v911, %v923
  %v944 = vadd.f32 %v912, %v925
  %v945 = vadd.f32 %v913, %v927
  %v946 = vadd.f32 %v914, %v929
  %v947 = vadd.f32 %v915, %v931
  %v948 = vand.u32 2147483647, %v940
  %vm949 = vcmp.le.f32.partialorder %v948, 0.7853982
  %vm950 = vcmp.lt.s32.totalorder %v940, 0
  %v951 = vand.u32 %v940, 2139095040
  %v952 = vshrl.u32 %v951, 23
  %v953 = vsub.s32 %v952, 127
  %v954 = vand.u32 2147483647, %v940
  %v955 = vand.u32 %v954, 8388607
  %v956 = vor.u32 %v955, 8388608
  %v957 = vsub.s32 0, %v956
  %v958 = vadd.s32 %v953, 1
  %vm959 = vcmp.gt.s32.totalorder %v958, 0
  %v960 = vsel %vm959, %v958, 0
  %v961 = vshrl.u32 %v960, 5
  %v962 = vand.u32 %v960, 31
  %v963 = vsub.s32 32, %v962
  %v964 = vshrl.u32 683565275, %v963
  %v965 = vshll.u32 683565275, %v962
  %v966 = vshrl.u32 2475754826, %v963
  %v967 = vor.u32 %v965, %v966
  %v968 = vshll.u32 2475754826, %v962
  %v969 = vshrl.u32 2131351028, %v963
  %v970 = vor.u32 %v968, %v969
  %v971 = vshll.u32 2131351028, %v962
  %v972 = vshrl.u32 2102212464, %v963
  %v973 = vor.u32 %v971, %v972
  %v974 = vshll.u32 2102212464, %v962
  %v975 = vshrl.u32 920167782, %v963
  %v976 = vor.u32 %v974, %v975
  %v977 = vshll.u32 920167782, %v962
  %v978 = vshrl.u32 1326507024, %v963
  %v979 = vor.u32 %v977, %v978
  %vm980 = vcmp.lt.s32.totalorder %v961, 1
  %vm981 = vcmp.lt.s32.totalorder %v961, 2
  %vm982 = vcmp.lt.s32.totalorder %v961, 3
  %vm983 = vcmp.lt.s32.totalorder %v961, 4
  %v984 = vsel %vm980, %v964, %v967
  %v985 = vsel %vm983, %v973, 2102212464
  %v986 = vsel %vm982, %v970, %v985
  %v987 = vsel %vm981, %v984, %v986
  %v988 = vsel %vm980, %v967, %v970
  %v989 = vsel %vm983, %v976, 920167782
  %v990 = vsel %vm982, %v973, %v989
  %v991 = vsel %vm981, %v988, %v990
  %v992 = vsel %vm980, %v970, %v973
  %v993 = vsel %vm983, %v979, 1326507024
  %v994 = vsel %vm982, %v976, %v993
  %v995 = vsel %vm981, %v992, %v994
  %v996 = vshll.u32 %v956, 8
  %v997 = vmul.u32.u64.compose %v996, %v995
  %v998 = vextract.low.u32 %v997
  %v999 = vextract.high.u32 %v997
  %v1000 = vmul.u32.u64.compose %v996, %v991
  %v1001 = vextract.low.u32 %v1000
  %v1002 = vextract.high.u32 %v1000
  %v1003 = vmul.u32 %v996, %v987
  %v1004 = vadd.s32 %v999, %v1001
  %vm1005 = vc.u32 %v999, %v1001
  %v1006 = vadd.s32 %v1002, 1
  %v1007 = vsel %vm1005, %v1006, %v1002
  %v1008 = vadd.s32 %v1003, %v1007
  %v1009 = vadd.s32 %v1008, 536870912
  %v1010 = vshrl.u32 %v1009, 30
  %v1011 = vshll.u32 %v1010, 30
  %v1012 = vsub.s32 %v1008, %v1011
  %vm1013 = vcmp.lt.s32.totalorder %v1012, 0
  %v1014 = vsub.s32 0, %v1012
  %v1015 = vsel %vm1013, %v1014, %v1012
  %v1016 = vclz %v1015
  %v1017 = vsub.s32 %v1016, 2
  %vm1018 = vcmp.gt.s32.totalorder 0, %v1017
  %v1019 = vsel %vm1018, 0, %v1017
  %v1020 = vsub.s32 32, %v1019
  %v1021 = vshll.u32 %v1012, %v1019
  %v1022 = vshrl.u32 %v1004, %v1020
  %v1023 = vor.u32 %v1021, %v1022
  %v1024 = vsub.s32 4294967266, %v1019
  %v1025 = vadd.s32 %v1024, 127
  %v1026 = vshll.u32 %v1025, 23
  %v1027 = vor.u32 4788187, %v1026
  %v1028 = vand.u32 2147483647, %v1027
  %v1030 = vcvt.s32.f32 %v1023
  %v1031 = vmul.f32 %v1030, %v1028
  %v1032 = vxor.u32 %v1031, 2147483648
  %v1033 = vsel %vm950, %v1032, %v1031
  %v1034 = vsub.s32 4, %v1010
  %v1035 = vsel %vm950, %v1034, %v1010
  %v1036 = vsel %vm949, %v940, %v1033
  %v1037 = vsel %vm949, 0, %v1035
  %v1038 = vcosq.f32.pop %v1036
  %v1039 = vsinq.f32.pop %v1036
  %vm1040 = vweird.f32 %v940
  %v1041 = vadd.s32 %v1037, 3
  %v1042 = vand.u32 %v1041, 3
  %vm1043 = vcmp.lt.s32.totalorder %v1042, 2
  %vm1044 = vcmp.eq.s32.totalorder %v1042, 0
  %v1045 = vxor.u32 %v1039, 2147483648
  %v1046 = vsel %vm1044, %v1038, %v1045
  %vm1047 = vcmp.eq.s32.totalorder %v1042, 2
  %v1048 = vxor.u32 %v1038, 2147483648
  %v1049 = vsel %vm1047, %v1048, %v1039
  %v1050 = vsel %vm1043, %v1046, %v1049
  %v1051 = vsel %vm1040, nan, %v1050
  %v1052 = vand.u32 2147483647, %v941
  %vm1053 = vcmp.le.f32.partialorder %v1052, 0.7853982
  %vm1054 = vcmp.lt.s32.totalorder %v941, 0
  %v1055 = vand.u32 %v941, 2139095040
  %v1056 = vshrl.u32 %v1055, 23
  %v1057 = vsub.s32 %v1056, 127
  %v1058 = vand.u32 2147483647, %v941
  %v1059 = vand.u32 %v1058, 8388607
  %v1060 = vor.u32 %v1059, 8388608
  %v1061 = vsub.s32 0, %v1060
  %v1062 = vadd.s32 %v1057, 1
  %vm1063 = vcmp.gt.s32.totalorder %v1062, 0
  %v1064 = vsel %vm1063, %v1062, 0
  %v1065 = vshrl.u32 %v1064, 5
  %v1066 = vand.u32 %v1064, 31
  %v1067 = vsub.s32 32, %v1066
  %v1068 = vshrl.u32 683565275, %v1067
  %v1069 = vshll.u32 683565275, %v1066
  %v1070 = vshrl.u32 2475754826, %v1067
  %v1071 = vor.u32 %v1069, %v1070
  %v1072 = vshll.u32 2475754826, %v1066
  %v1073 = vshrl.u32 2131351028, %v1067
  %v1074 = vor.u32 %v1072, %v1073
  %v1075 = vshll.u32 2131351028, %v1066
  %v1076 = vshrl.u32 2102212464, %v1067
  %v1077 = vor.u32 %v1075, %v1076
  %v1078 = vshll.u32 2102212464, %v1066
  %v1079 = vshrl.u32 920167782, %v1067
  %v1080 = vor.u32 %v1078, %v1079
  %v1081 = vshll.u32 920167782, %v1066
  %v1082 = vshrl.u32 1326507024, %v1067
  %v1083 = vor.u32 %v1081, %v1082
  %vm1084 = vcmp.lt.s32.totalorder %v1065, 1
  %vm1085 = vcmp.lt.s32.totalorder %v1065, 2
  %vm1086 = vcmp.lt.s32.totalorder %v1065, 3
  %vm1087 = vcmp.lt.s32.totalorder %v1065, 4
  %v1088 = vsel %vm1084, %v1068, %v1071
  %v1089 = vsel %vm1087, %v1077, 2102212464
  %v1090 = vsel %vm1086, %v1074, %v1089
  %v1091 = vsel %vm1085, %v1088, %v1090
  %v1092 = vsel %vm1084, %v1071, %v1074
  %v1093 = vsel %vm1087, %v1080, 920167782
  %v1094 = vsel %vm1086, %v1077, %v1093
  %v1095 = vsel %vm1085, %v1092, %v1094
  %v1096 = vsel %vm1084, %v1074, %v1077
  %v1097 = vsel %vm1087, %v1083, 1326507024
  %v1098 = vsel %vm1086, %v1080, %v1097
  %v1099 = vsel %vm1085, %v1096, %v1098
  %v1100 = vshll.u32 %v1060, 8
  %v1101 = vmul.u32.u64.compose %v1100, %v1099
  %v1102 = vextract.low.u32 %v1101
  %v1103 = vextract.high.u32 %v1101
  %v1104 = vmul.u32.u64.compose %v1100, %v1095
  %v1105 = vextract.low.u32 %v1104
  %v1106 = vextract.high.u32 %v1104
  %v1107 = vmul.u32 %v1100, %v1091
  %v1108 = vadd.s32 %v1103, %v1105
  %vm1109 = vc.u32 %v1103, %v1105
  %v1110 = vadd.s32 %v1106, 1
  %v1111 = vsel %vm1109, %v1110, %v1106
  %v1112 = vadd.s32 %v1107, %v1111
  %v1113 = vadd.s32 %v1112, 536870912
  %v1114 = vshrl.u32 %v1113, 30
  %v1115 = vshll.u32 %v1114, 30
  %v1116 = vsub.s32 %v1112, %v1115
  %vm1117 = vcmp.lt.s32.totalorder %v1116, 0
  %v1118 = vsub.s32 0, %v1116
  %v1119 = vsel %vm1117, %v1118, %v1116
  %v1120 = vclz %v1119
  %v1121 = vsub.s32 %v1120, 2
  %vm1122 = vcmp.gt.s32.totalorder 0, %v1121
  %v1123 = vsel %vm1122, 0, %v1121
  %v1124 = vsub.s32 32, %v1123
  %v1125 = vshll.u32 %v1116, %v1123
  %v1126 = vshrl.u32 %v1108, %v1124
  %v1127 = vor.u32 %v1125, %v1126
  %v1128 = vsub.s32 4294967266, %v1123
  %v1129 = vadd.s32 %v1128, 127
  %v1130 = vshll.u32 %v1129, 23
  %v1131 = vor.u32 4788187, %v1130
  %v1132 = vand.u32 2147483647, %v1131
  %v1134 = vcvt.s32.f32 %v1127
  %v1135 = vmul.f32 %v1134, %v1132
  %v1136 = vxor.u32 %v1135, 2147483648
  %v1137 = vsel %vm1054, %v1136, %v1135
  %v1138 = vsub.s32 4, %v1114
  %v1139 = vsel %vm1054, %v1138, %v1114
  %v1140 = vsel %vm1053, %v941, %v1137
  %v1141 = vsel %vm1053, 0, %v1139
  %v1142 = vcosq.f32.pop %v1140
  %v1143 = vsinq.f32.pop %v1140
  %vm1144 = vweird.f32 %v941
  %v1145 = vadd.s32 %v1141, 3
  %v1146 = vand.u32 %v1145, 3
  %vm1147 = vcmp.lt.s32.totalorder %v1146, 2
  %vm1148 = vcmp.eq.s32.totalorder %v1146, 0
  %v1149 = vxor.u32 %v1143, 2147483648
  %v1150 = vsel %vm1148, %v1142, %v1149
  %vm1151 = vcmp.eq.s32.totalorder %v1146, 2
  %v1152 = vxor.u32 %v1142, 2147483648
  %v1153 = vsel %vm1151, %v1152, %v1143
  %v1154 = vsel %vm1147, %v1150, %v1153
  %v1155 = vsel %vm1144, nan, %v1154
  %v1156 = vand.u32 2147483647, %v942
  %vm1157 = vcmp.le.f32.partialorder %v1156, 0.7853982
  %vm1158 = vcmp.lt.s32.totalorder %v942, 0
  %v1159 = vand.u32 %v942, 2139095040
  %v1160 = vshrl.u32 %v1159, 23
  %v1161 = vsub.s32 %v1160, 127
  %v1162 = vand.u32 2147483647, %v942
  %v1163 = vand.u32 %v1162, 8388607
  %v1164 = vor.u32 %v1163, 8388608
  %v1165 = vsub.s32 0, %v1164
  %v1166 = vadd.s32 %v1161, 1
  %vm1167 = vcmp.gt.s32.totalorder %v1166, 0
  %v1168 = vsel %vm1167, %v1166, 0
  %v1169 = vshrl.u32 %v1168, 5
  %v1170 = vand.u32 %v1168, 31
  %v1171 = vsub.s32 32, %v1170
  %v1172 = vshrl.u32 683565275, %v1171
  %v1173 = vshll.u32 683565275, %v1170
  %v1174 = vshrl.u32 2475754826, %v1171
  %v1175 = vor.u32 %v1173, %v1174
  %v1176 = vshll.u32 2475754826, %v1170
  %v1177 = vshrl.u32 2131351028, %v1171
  %v1178 = vor.u32 %v1176, %v1177
  %v1179 = vshll.u32 2131351028, %v1170
  %v1180 = vshrl.u32 2102212464, %v1171
  %v1181 = vor.u32 %v1179, %v1180
  %v1182 = vshll.u32 2102212464, %v1170
  %v1183 = vshrl.u32 920167782, %v1171
  %v1184 = vor.u32 %v1182, %v1183
  %v1185 = vshll.u32 920167782, %v1170
  %v1186 = vshrl.u32 1326507024, %v1171
  %v1187 = vor.u32 %v1185, %v1186
  %vm1188 = vcmp.lt.s32.totalorder %v1169, 1
  %vm1189 = vcmp.lt.s32.totalorder %v1169, 2
  %vm1190 = vcmp.lt.s32.totalorder %v1169, 3
  %vm1191 = vcmp.lt.s32.totalorder %v1169, 4
  %v1192 = vsel %vm1188, %v1172, %v1175
  %v1193 = vsel %vm1191, %v1181, 2102212464
  %v1194 = vsel %vm1190, %v1178, %v1193
  %v1195 = vsel %vm1189, %v1192, %v1194
  %v1196 = vsel %vm1188, %v1175, %v1178
  %v1197 = vsel %vm1191, %v1184, 920167782
  %v1198 = vsel %vm1190, %v1181, %v1197
  %v1199 = vsel %vm1189, %v1196, %v1198
  %v1200 = vsel %vm1188, %v1178, %v1181
  %v1201 = vsel %vm1191, %v1187, 1326507024
  %v1202 = vsel %vm1190, %v1184, %v1201
  %v1203 = vsel %vm1189, %v1200, %v1202
  %v1204 = vshll.u32 %v1164, 8
  %v1205 = vmul.u32.u64.compose %v1204, %v1203
  %v1206 = vextract.low.u32 %v1205
  %v1207 = vextract.high.u32 %v1205
  %v1208 = vmul.u32.u64.compose %v1204, %v1199
  %v1209 = vextract.low.u32 %v1208
  %v1210 = vextract.high.u32 %v1208
  %v1211 = vmul.u32 %v1204, %v1195
  %v1212 = vadd.s32 %v1207, %v1209
  %vm1213 = vc.u32 %v1207, %v1209
  %v1214 = vadd.s32 %v1210, 1
  %v1215 = vsel %vm1213, %v1214, %v1210
  %v1216 = vadd.s32 %v1211, %v1215
  %v1217 = vadd.s32 %v1216, 536870912
  %v1218 = vshrl.u32 %v1217, 30
  %v1219 = vshll.u32 %v1218, 30
  %v1220 = vsub.s32 %v1216, %v1219
  %vm1221 = vcmp.lt.s32.totalorder %v1220, 0
  %v1222 = vsub.s32 0, %v1220
  %v1223 = vsel %vm1221, %v1222, %v1220
  %v1224 = vclz %v1223
  %v1225 = vsub.s32 %v1224, 2
  %vm1226 = vcmp.gt.s32.totalorder 0, %v1225
  %v1227 = vsel %vm1226, 0, %v1225
  %v1228 = vsub.s32 32, %v1227
  %v1229 = vshll.u32 %v1220, %v1227
  %v1230 = vshrl.u32 %v1212, %v1228
  %v1231 = vor.u32 %v1229, %v1230
  %v1232 = vsub.s32 4294967266, %v1227
  %v1233 = vadd.s32 %v1232, 127
  %v1234 = vshll.u32 %v1233, 23
  %v1235 = vor.u32 4788187, %v1234
  %v1236 = vand.u32 2147483647, %v1235
  %v1238 = vcvt.s32.f32 %v1231
  %v1239 = vmul.f32 %v1238, %v1236
  %v1240 = vxor.u32 %v1239, 2147483648
  %v1241 = vsel %vm1158, %v1240, %v1239
  %v1242 = vsub.s32 4, %v1218
  %v1243 = vsel %vm1158, %v1242, %v1218
  %v1244 = vsel %vm1157, %v942, %v1241
  %v1245 = vsel %vm1157, 0, %v1243
  %v1246 = vcosq.f32.pop %v1244
  %v1247 = vsinq.f32.pop %v1244
  %vm1248 = vweird.f32 %v942
  %v1249 = vadd.s32 %v1245, 3
  %v1250 = vand.u32 %v1249, 3
  %vm1251 = vcmp.lt.s32.totalorder %v1250, 2
  %vm1252 = vcmp.eq.s32.totalorder %v1250, 0
  %v1253 = vxor.u32 %v1247, 2147483648
  %v1254 = vsel %vm1252, %v1246, %v1253
  %vm1255 = vcmp.eq.s32.totalorder %v1250, 2
  %v1256 = vxor.u32 %v1246, 2147483648
  %v1257 = vsel %vm1255, %v1256, %v1247
  %v1258 = vsel %vm1251, %v1254, %v1257
  %v1259 = vsel %vm1248, nan, %v1258
  %v1260 = vand.u32 2147483647, %v943
  %vm1261 = vcmp.le.f32.partialorder %v1260, 0.7853982
  %vm1262 = vcmp.lt.s32.totalorder %v943, 0
  %v1263 = vand.u32 %v943, 2139095040
  %v1264 = vshrl.u32 %v1263, 23
  %v1265 = vsub.s32 %v1264, 127
  %v1266 = vand.u32 2147483647, %v943
  %v1267 = vand.u32 %v1266, 8388607
  %v1268 = vor.u32 %v1267, 8388608
  %v1269 = vsub.s32 0, %v1268
  %v1270 = vadd.s32 %v1265, 1
  %vm1271 = vcmp.gt.s32.totalorder %v1270, 0
  %v1272 = vsel %vm1271, %v1270, 0
  %v1273 = vshrl.u32 %v1272, 5
  %v1274 = vand.u32 %v1272, 31
  %v1275 = vsub.s32 32, %v1274
  %v1276 = vshrl.u32 683565275, %v1275
  %v1277 = vshll.u32 683565275, %v1274
  %v1278 = vshrl.u32 2475754826, %v1275
  %v1279 = vor.u32 %v1277, %v1278
  %v1280 = vshll.u32 2475754826, %v1274
  %v1281 = vshrl.u32 2131351028, %v1275
  %v1282 = vor.u32 %v1280, %v1281
  %v1283 = vshll.u32 2131351028, %v1274
  %v1284 = vshrl.u32 2102212464, %v1275
  %v1285 = vor.u32 %v1283, %v1284
  %v1286 = vshll.u32 2102212464, %v1274
  %v1287 = vshrl.u32 920167782, %v1275
  %v1288 = vor.u32 %v1286, %v1287
  %v1289 = vshll.u32 920167782, %v1274
  %v1290 = vshrl.u32 1326507024, %v1275
  %v1291 = vor.u32 %v1289, %v1290
  %vm1292 = vcmp.lt.s32.totalorder %v1273, 1
  %vm1293 = vcmp.lt.s32.totalorder %v1273, 2
  %vm1294 = vcmp.lt.s32.totalorder %v1273, 3
  %vm1295 = vcmp.lt.s32.totalorder %v1273, 4
  %v1296 = vsel %vm1292, %v1276, %v1279
  %v1297 = vsel %vm1295, %v1285, 2102212464
  %v1298 = vsel %vm1294, %v1282, %v1297
  %v1299 = vsel %vm1293, %v1296, %v1298
  %v1300 = vsel %vm1292, %v1279, %v1282
  %v1301 = vsel %vm1295, %v1288, 920167782
  %v1302 = vsel %vm1294, %v1285, %v1301
  %v1303 = vsel %vm1293, %v1300, %v1302
  %v1304 = vsel %vm1292, %v1282, %v1285
  %v1305 = vsel %vm1295, %v1291, 1326507024
  %v1306 = vsel %vm1294, %v1288, %v1305
  %v1307 = vsel %vm1293, %v1304, %v1306
  %v1308 = vshll.u32 %v1268, 8
  %v1309 = vmul.u32.u64.compose %v1308, %v1307
  %v1310 = vextract.low.u32 %v1309
  %v1311 = vextract.high.u32 %v1309
  %v1312 = vmul.u32.u64.compose %v1308, %v1303
  %v1313 = vextract.low.u32 %v1312
  %v1314 = vextract.high.u32 %v1312
  %v1315 = vmul.u32 %v1308, %v1299
  %v1316 = vadd.s32 %v1311, %v1313
  %vm1317 = vc.u32 %v1311, %v1313
  %v1318 = vadd.s32 %v1314, 1
  %v1319 = vsel %vm1317, %v1318, %v1314
  %v1320 = vadd.s32 %v1315, %v1319
  %v1321 = vadd.s32 %v1320, 536870912
  %v1322 = vshrl.u32 %v1321, 30
  %v1323 = vshll.u32 %v1322, 30
  %v1324 = vsub.s32 %v1320, %v1323
  %vm1325 = vcmp.lt.s32.totalorder %v1324, 0
  %v1326 = vsub.s32 0, %v1324
  %v1327 = vsel %vm1325, %v1326, %v1324
  %v1328 = vclz %v1327
  %v1329 = vsub.s32 %v1328, 2
  %vm1330 = vcmp.gt.s32.totalorder 0, %v1329
  %v1331 = vsel %vm1330, 0, %v1329
  %v1332 = vsub.s32 32, %v1331
  %v1333 = vshll.u32 %v1324, %v1331
  %v1334 = vshrl.u32 %v1316, %v1332
  %v1335 = vor.u32 %v1333, %v1334
  %v1336 = vsub.s32 4294967266, %v1331
  %v1337 = vadd.s32 %v1336, 127
  %v1338 = vshll.u32 %v1337, 23
  %v1339 = vor.u32 4788187, %v1338
  %v1340 = vand.u32 2147483647, %v1339
  %v1342 = vcvt.s32.f32 %v1335
  %v1343 = vmul.f32 %v1342, %v1340
  %v1344 = vxor.u32 %v1343, 2147483648
  %v1345 = vsel %vm1262, %v1344, %v1343
  %v1346 = vsub.s32 4, %v1322
  %v1347 = vsel %vm1262, %v1346, %v1322
  %v1348 = vsel %vm1261, %v943, %v1345
  %v1349 = vsel %vm1261, 0, %v1347
  %v1350 = vcosq.f32.pop %v1348
  %v1351 = vsinq.f32.pop %v1348
  %vm1352 = vweird.f32 %v943
  %v1353 = vadd.s32 %v1349, 3
  %v1354 = vand.u32 %v1353, 3
  %vm1355 = vcmp.lt.s32.totalorder %v1354, 2
  %vm1356 = vcmp.eq.s32.totalorder %v1354, 0
  %v1357 = vxor.u32 %v1351, 2147483648
  %v1358 = vsel %vm1356, %v1350, %v1357
  %vm1359 = vcmp.eq.s32.totalorder %v1354, 2
  %v1360 = vxor.u32 %v1350, 2147483648
  %v1361 = vsel %vm1359, %v1360, %v1351
  %v1362 = vsel %vm1355, %v1358, %v1361
  %v1363 = vsel %vm1352, nan, %v1362
  %v1364 = vand.u32 2147483647, %v944
  %vm1365 = vcmp.le.f32.partialorder %v1364, 0.7853982
  %vm1366 = vcmp.lt.s32.totalorder %v944, 0
  %v1367 = vand.u32 %v944, 2139095040
  %v1368 = vshrl.u32 %v1367, 23
  %v1369 = vsub.s32 %v1368, 127
  %v1370 = vand.u32 2147483647, %v944
  %v1371 = vand.u32 %v1370, 8388607
  %v1372 = vor.u32 %v1371, 8388608
  %v1373 = vsub.s32 0, %v1372
  %v1374 = vadd.s32 %v1369, 1
  %vm1375 = vcmp.gt.s32.totalorder %v1374, 0
  %v1376 = vsel %vm1375, %v1374, 0
  %v1377 = vshrl.u32 %v1376, 5
  %v1378 = vand.u32 %v1376, 31
  %v1379 = vsub.s32 32, %v1378
  %v1380 = vshrl.u32 683565275, %v1379
  %v1381 = vshll.u32 683565275, %v1378
  %v1382 = vshrl.u32 2475754826, %v1379
  %v1383 = vor.u32 %v1381, %v1382
  %v1384 = vshll.u32 2475754826, %v1378
  %v1385 = vshrl.u32 2131351028, %v1379
  %v1386 = vor.u32 %v1384, %v1385
  %v1387 = vshll.u32 2131351028, %v1378
  %v1388 = vshrl.u32 2102212464, %v1379
  %v1389 = vor.u32 %v1387, %v1388
  %v1390 = vshll.u32 2102212464, %v1378
  %v1391 = vshrl.u32 920167782, %v1379
  %v1392 = vor.u32 %v1390, %v1391
  %v1393 = vshll.u32 920167782, %v1378
  %v1394 = vshrl.u32 1326507024, %v1379
  %v1395 = vor.u32 %v1393, %v1394
  %vm1396 = vcmp.lt.s32.totalorder %v1377, 1
  %vm1397 = vcmp.lt.s32.totalorder %v1377, 2
  %vm1398 = vcmp.lt.s32.totalorder %v1377, 3
  %vm1399 = vcmp.lt.s32.totalorder %v1377, 4
  %v1400 = vsel %vm1396, %v1380, %v1383
  %v1401 = vsel %vm1399, %v1389, 2102212464
  %v1402 = vsel %vm1398, %v1386, %v1401
  %v1403 = vsel %vm1397, %v1400, %v1402
  %v1404 = vsel %vm1396, %v1383, %v1386
  %v1405 = vsel %vm1399, %v1392, 920167782
  %v1406 = vsel %vm1398, %v1389, %v1405
  %v1407 = vsel %vm1397, %v1404, %v1406
  %v1408 = vsel %vm1396, %v1386, %v1389
  %v1409 = vsel %vm1399, %v1395, 1326507024
  %v1410 = vsel %vm1398, %v1392, %v1409
  %v1411 = vsel %vm1397, %v1408, %v1410
  %v1412 = vshll.u32 %v1372, 8
  %v1413 = vmul.u32.u64.compose %v1412, %v1411
  %v1414 = vextract.low.u32 %v1413
  %v1415 = vextract.high.u32 %v1413
  %v1416 = vmul.u32.u64.compose %v1412, %v1407
  %v1417 = vextract.low.u32 %v1416
  %v1418 = vextract.high.u32 %v1416
  %v1419 = vmul.u32 %v1412, %v1403
  %v1420 = vadd.s32 %v1415, %v1417
  %vm1421 = vc.u32 %v1415, %v1417
  %v1422 = vadd.s32 %v1418, 1
  %v1423 = vsel %vm1421, %v1422, %v1418
  %v1424 = vadd.s32 %v1419, %v1423
  %v1425 = vadd.s32 %v1424, 536870912
  %v1426 = vshrl.u32 %v1425, 30
  %v1427 = vshll.u32 %v1426, 30
  %v1428 = vsub.s32 %v1424, %v1427
  %vm1429 = vcmp.lt.s32.totalorder %v1428, 0
  %v1430 = vsub.s32 0, %v1428
  %v1431 = vsel %vm1429, %v1430, %v1428
  %v1432 = vclz %v1431
  %v1433 = vsub.s32 %v1432, 2
  %vm1434 = vcmp.gt.s32.totalorder 0, %v1433
  %v1435 = vsel %vm1434, 0, %v1433
  %v1436 = vsub.s32 32, %v1435
  %v1437 = vshll.u32 %v1428, %v1435
  %v1438 = vshrl.u32 %v1420, %v1436
  %v1439 = vor.u32 %v1437, %v1438
  %v1440 = vsub.s32 4294967266, %v1435
  %v1441 = vadd.s32 %v1440, 127
  %v1442 = vshll.u32 %v1441, 23
  %v1443 = vor.u32 4788187, %v1442
  %v1444 = vand.u32 2147483647, %v1443
  %v1446 = vcvt.s32.f32 %v1439
  %v1447 = vmul.f32 %v1446, %v1444
  %v1448 = vxor.u32 %v1447, 2147483648
  %v1449 = vsel %vm1366, %v1448, %v1447
  %v1450 = vsub.s32 4, %v1426
  %v1451 = vsel %vm1366, %v1450, %v1426
  %v1452 = vsel %vm1365, %v944, %v1449
  %v1453 = vsel %vm1365, 0, %v1451
  %v1454 = vcosq.f32.pop %v1452
  %v1455 = vsinq.f32.pop %v1452
  %vm1456 = vweird.f32 %v944
  %v1457 = vadd.s32 %v1453, 3
  %v1458 = vand.u32 %v1457, 3
  %vm1459 = vcmp.lt.s32.totalorder %v1458, 2
  %vm1460 = vcmp.eq.s32.totalorder %v1458, 0
  %v1461 = vxor.u32 %v1455, 2147483648
  %v1462 = vsel %vm1460, %v1454, %v1461
  %vm1463 = vcmp.eq.s32.totalorder %v1458, 2
  %v1464 = vxor.u32 %v1454, 2147483648
  %v1465 = vsel %vm1463, %v1464, %v1455
  %v1466 = vsel %vm1459, %v1462, %v1465
  %v1467 = vsel %vm1456, nan, %v1466
  %v1468 = vand.u32 2147483647, %v945
  %vm1469 = vcmp.le.f32.partialorder %v1468, 0.7853982
  %vm1470 = vcmp.lt.s32.totalorder %v945, 0
  %v1471 = vand.u32 %v945, 2139095040
  %v1472 = vshrl.u32 %v1471, 23
  %v1473 = vsub.s32 %v1472, 127
  %v1474 = vand.u32 2147483647, %v945
  %v1475 = vand.u32 %v1474, 8388607
  %v1476 = vor.u32 %v1475, 8388608
  %v1477 = vsub.s32 0, %v1476
  %v1478 = vadd.s32 %v1473, 1
  %vm1479 = vcmp.gt.s32.totalorder %v1478, 0
  %v1480 = vsel %vm1479, %v1478, 0
  %v1481 = vshrl.u32 %v1480, 5
  %v1482 = vand.u32 %v1480, 31
  %v1483 = vsub.s32 32, %v1482
  %v1484 = vshrl.u32 683565275, %v1483
  %v1485 = vshll.u32 683565275, %v1482
  %v1486 = vshrl.u32 2475754826, %v1483
  %v1487 = vor.u32 %v1485, %v1486
  %v1488 = vshll.u32 2475754826, %v1482
  %v1489 = vshrl.u32 2131351028, %v1483
  %v1490 = vor.u32 %v1488, %v1489
  %v1491 = vshll.u32 2131351028, %v1482
  %v1492 = vshrl.u32 2102212464, %v1483
  %v1493 = vor.u32 %v1491, %v1492
  %v1494 = vshll.u32 2102212464, %v1482
  %v1495 = vshrl.u32 920167782, %v1483
  %v1496 = vor.u32 %v1494, %v1495
  %v1497 = vshll.u32 920167782, %v1482
  %v1498 = vshrl.u32 1326507024, %v1483
  %v1499 = vor.u32 %v1497, %v1498
  %vm1500 = vcmp.lt.s32.totalorder %v1481, 1
  %vm1501 = vcmp.lt.s32.totalorder %v1481, 2
  %vm1502 = vcmp.lt.s32.totalorder %v1481, 3
  %vm1503 = vcmp.lt.s32.totalorder %v1481, 4
  %v1504 = vsel %vm1500, %v1484, %v1487
  %v1505 = vsel %vm1503, %v1493, 2102212464
  %v1506 = vsel %vm1502, %v1490, %v1505
  %v1507 = vsel %vm1501, %v1504, %v1506
  %v1508 = vsel %vm1500, %v1487, %v1490
  %v1509 = vsel %vm1503, %v1496, 920167782
  %v1510 = vsel %vm1502, %v1493, %v1509
  %v1511 = vsel %vm1501, %v1508, %v1510
  %v1512 = vsel %vm1500, %v1490, %v1493
  %v1513 = vsel %vm1503, %v1499, 1326507024
  %v1514 = vsel %vm1502, %v1496, %v1513
  %v1515 = vsel %vm1501, %v1512, %v1514
  %v1516 = vshll.u32 %v1476, 8
  %v1517 = vmul.u32.u64.compose %v1516, %v1515
  %v1518 = vextract.low.u32 %v1517
  %v1519 = vextract.high.u32 %v1517
  %v1520 = vmul.u32.u64.compose %v1516, %v1511
  %v1521 = vextract.low.u32 %v1520
  %v1522 = vextract.high.u32 %v1520
  %v1523 = vmul.u32 %v1516, %v1507
  %v1524 = vadd.s32 %v1519, %v1521
  %vm1525 = vc.u32 %v1519, %v1521
  %v1526 = vadd.s32 %v1522, 1
  %v1527 = vsel %vm1525, %v1526, %v1522
  %v1528 = vadd.s32 %v1523, %v1527
  %v1529 = vadd.s32 %v1528, 536870912
  %v1530 = vshrl.u32 %v1529, 30
  %v1531 = vshll.u32 %v1530, 30
  %v1532 = vsub.s32 %v1528, %v1531
  %vm1533 = vcmp.lt.s32.totalorder %v1532, 0
  %v1534 = vsub.s32 0, %v1532
  %v1535 = vsel %vm1533, %v1534, %v1532
  %v1536 = vclz %v1535
  %v1537 = vsub.s32 %v1536, 2
  %vm1538 = vcmp.gt.s32.totalorder 0, %v1537
  %v1539 = vsel %vm1538, 0, %v1537
  %v1540 = vsub.s32 32, %v1539
  %v1541 = vshll.u32 %v1532, %v1539
  %v1542 = vshrl.u32 %v1524, %v1540
  %v1543 = vor.u32 %v1541, %v1542
  %v1544 = vsub.s32 4294967266, %v1539
  %v1545 = vadd.s32 %v1544, 127
  %v1546 = vshll.u32 %v1545, 23
  %v1547 = vor.u32 4788187, %v1546
  %v1548 = vand.u32 2147483647, %v1547
  %v1550 = vcvt.s32.f32 %v1543
  %v1551 = vmul.f32 %v1550, %v1548
  %v1552 = vxor.u32 %v1551, 2147483648
  %v1553 = vsel %vm1470, %v1552, %v1551
  %v1554 = vsub.s32 4, %v1530
  %v1555 = vsel %vm1470, %v1554, %v1530
  %v1556 = vsel %vm1469, %v945, %v1553
  %v1557 = vsel %vm1469, 0, %v1555
  %v1558 = vcosq.f32.pop %v1556
  %v1559 = vsinq.f32.pop %v1556
  %vm1560 = vweird.f32 %v945
  %v1561 = vadd.s32 %v1557, 3
  %v1562 = vand.u32 %v1561, 3
  %vm1563 = vcmp.lt.s32.totalorder %v1562, 2
  %vm1564 = vcmp.eq.s32.totalorder %v1562, 0
  %v1565 = vxor.u32 %v1559, 2147483648
  %v1566 = vsel %vm1564, %v1558, %v1565
  %vm1567 = vcmp.eq.s32.totalorder %v1562, 2
  %v1568 = vxor.u32 %v1558, 2147483648
  %v1569 = vsel %vm1567, %v1568, %v1559
  %v1570 = vsel %vm1563, %v1566, %v1569
  %v1571 = vsel %vm1560, nan, %v1570
  %v1572 = vand.u32 2147483647, %v946
  %vm1573 = vcmp.le.f32.partialorder %v1572, 0.7853982
  %vm1574 = vcmp.lt.s32.totalorder %v946, 0
  %v1575 = vand.u32 %v946, 2139095040
  %v1576 = vshrl.u32 %v1575, 23
  %v1577 = vsub.s32 %v1576, 127
  %v1578 = vand.u32 2147483647, %v946
  %v1579 = vand.u32 %v1578, 8388607
  %v1580 = vor.u32 %v1579, 8388608
  %v1581 = vsub.s32 0, %v1580
  %v1582 = vadd.s32 %v1577, 1
  %vm1583 = vcmp.gt.s32.totalorder %v1582, 0
  %v1584 = vsel %vm1583, %v1582, 0
  %v1585 = vshrl.u32 %v1584, 5
  %v1586 = vand.u32 %v1584, 31
  %v1587 = vsub.s32 32, %v1586
  %v1588 = vshrl.u32 683565275, %v1587
  %v1589 = vshll.u32 683565275, %v1586
  %v1590 = vshrl.u32 2475754826, %v1587
  %v1591 = vor.u32 %v1589, %v1590
  %v1592 = vshll.u32 2475754826, %v1586
  %v1593 = vshrl.u32 2131351028, %v1587
  %v1594 = vor.u32 %v1592, %v1593
  %v1595 = vshll.u32 2131351028, %v1586
  %v1596 = vshrl.u32 2102212464, %v1587
  %v1597 = vor.u32 %v1595, %v1596
  %v1598 = vshll.u32 2102212464, %v1586
  %v1599 = vshrl.u32 920167782, %v1587
  %v1600 = vor.u32 %v1598, %v1599
  %v1601 = vshll.u32 920167782, %v1586
  %v1602 = vshrl.u32 1326507024, %v1587
  %v1603 = vor.u32 %v1601, %v1602
  %vm1604 = vcmp.lt.s32.totalorder %v1585, 1
  %vm1605 = vcmp.lt.s32.totalorder %v1585, 2
  %vm1606 = vcmp.lt.s32.totalorder %v1585, 3
  %vm1607 = vcmp.lt.s32.totalorder %v1585, 4
  %v1608 = vsel %vm1604, %v1588, %v1591
  %v1609 = vsel %vm1607, %v1597, 2102212464
  %v1610 = vsel %vm1606, %v1594, %v1609
  %v1611 = vsel %vm1605, %v1608, %v1610
  %v1612 = vsel %vm1604, %v1591, %v1594
  %v1613 = vsel %vm1607, %v1600, 920167782
  %v1614 = vsel %vm1606, %v1597, %v1613
  %v1615 = vsel %vm1605, %v1612, %v1614
  %v1616 = vsel %vm1604, %v1594, %v1597
  %v1617 = vsel %vm1607, %v1603, 1326507024
  %v1618 = vsel %vm1606, %v1600, %v1617
  %v1619 = vsel %vm1605, %v1616, %v1618
  %v1620 = vshll.u32 %v1580, 8
  %v1621 = vmul.u32.u64.compose %v1620, %v1619
  %v1622 = vextract.low.u32 %v1621
  %v1623 = vextract.high.u32 %v1621
  %v1624 = vmul.u32.u64.compose %v1620, %v1615
  %v1625 = vextract.low.u32 %v1624
  %v1626 = vextract.high.u32 %v1624
  %v1627 = vmul.u32 %v1620, %v1611
  %v1628 = vadd.s32 %v1623, %v1625
  %vm1629 = vc.u32 %v1623, %v1625
  %v1630 = vadd.s32 %v1626, 1
  %v1631 = vsel %vm1629, %v1630, %v1626
  %v1632 = vadd.s32 %v1627, %v1631
  %v1633 = vadd.s32 %v1632, 536870912
  %v1634 = vshrl.u32 %v1633, 30
  %v1635 = vshll.u32 %v1634, 30
  %v1636 = vsub.s32 %v1632, %v1635
  %vm1637 = vcmp.lt.s32.totalorder %v1636, 0
  %v1638 = vsub.s32 0, %v1636
  %v1639 = vsel %vm1637, %v1638, %v1636
  %v1640 = vclz %v1639
  %v1641 = vsub.s32 %v1640, 2
  %vm1642 = vcmp.gt.s32.totalorder 0, %v1641
  %v1643 = vsel %vm1642, 0, %v1641
  %v1644 = vsub.s32 32, %v1643
  %v1645 = vshll.u32 %v1636, %v1643
  %v1646 = vshrl.u32 %v1628, %v1644
  %v1647 = vor.u32 %v1645, %v1646
  %v1648 = vsub.s32 4294967266, %v1643
  %v1649 = vadd.s32 %v1648, 127
  %v1650 = vshll.u32 %v1649, 23
  %v1651 = vor.u32 4788187, %v1650
  %v1652 = vand.u32 2147483647, %v1651
  %v1654 = vcvt.s32.f32 %v1647
  %v1655 = vmul.f32 %v1654, %v1652
  %v1656 = vxor.u32 %v1655, 2147483648
  %v1657 = vsel %vm1574, %v1656, %v1655
  %v1658 = vsub.s32 4, %v1634
  %v1659 = vsel %vm1574, %v1658, %v1634
  %v1660 = vsel %vm1573, %v946, %v1657
  %v1661 = vsel %vm1573, 0, %v1659
  %v1662 = vcosq.f32.pop %v1660
  %v1663 = vsinq.f32.pop %v1660
  %vm1664 = vweird.f32 %v946
  %v1665 = vadd.s32 %v1661, 3
  %v1666 = vand.u32 %v1665, 3
  %vm1667 = vcmp.lt.s32.totalorder %v1666, 2
  %vm1668 = vcmp.eq.s32.totalorder %v1666, 0
  %v1669 = vxor.u32 %v1663, 2147483648
  %v1670 = vsel %vm1668, %v1662, %v1669
  %vm1671 = vcmp.eq.s32.totalorder %v1666, 2
  %v1672 = vxor.u32 %v1662, 2147483648
  %v1673 = vsel %vm1671, %v1672, %v1663
  %v1674 = vsel %vm1667, %v1670, %v1673
  %v1675 = vsel %vm1664, nan, %v1674
  %v1676 = vand.u32 2147483647, %v947
  %vm1677 = vcmp.le.f32.partialorder %v1676, 0.7853982
  %vm1678 = vcmp.lt.s32.totalorder %v947, 0
  %v1679 = vand.u32 %v947, 2139095040
  %v1680 = vshrl.u32 %v1679, 23
  %v1681 = vsub.s32 %v1680, 127
  %v1682 = vand.u32 2147483647, %v947
  %v1683 = vand.u32 %v1682, 8388607
  %v1684 = vor.u32 %v1683, 8388608
  %v1685 = vsub.s32 0, %v1684
  %v1686 = vadd.s32 %v1681, 1
  %vm1687 = vcmp.gt.s32.totalorder %v1686, 0
  %v1688 = vsel %vm1687, %v1686, 0
  %v1689 = vshrl.u32 %v1688, 5
  %v1690 = vand.u32 %v1688, 31
  %v1691 = vsub.s32 32, %v1690
  %v1692 = vshrl.u32 683565275, %v1691
  %v1693 = vshll.u32 683565275, %v1690
  %v1694 = vshrl.u32 2475754826, %v1691
  %v1695 = vor.u32 %v1693, %v1694
  %v1696 = vshll.u32 2475754826, %v1690
  %v1697 = vshrl.u32 2131351028, %v1691
  %v1698 = vor.u32 %v1696, %v1697
  %v1699 = vshll.u32 2131351028, %v1690
  %v1700 = vshrl.u32 2102212464, %v1691
  %v1701 = vor.u32 %v1699, %v1700
  %v1702 = vshll.u32 2102212464, %v1690
  %v1703 = vshrl.u32 920167782, %v1691
  %v1704 = vor.u32 %v1702, %v1703
  %v1705 = vshll.u32 920167782, %v1690
  %v1706 = vshrl.u32 1326507024, %v1691
  %v1707 = vor.u32 %v1705, %v1706
  %vm1708 = vcmp.lt.s32.totalorder %v1689, 1
  %vm1709 = vcmp.lt.s32.totalorder %v1689, 2
  %vm1710 = vcmp.lt.s32.totalorder %v1689, 3
  %vm1711 = vcmp.lt.s32.totalorder %v1689, 4
  %v1712 = vsel %vm1708, %v1692, %v1695
  %v1713 = vsel %vm1711, %v1701, 2102212464
  %v1714 = vsel %vm1710, %v1698, %v1713
  %v1715 = vsel %vm1709, %v1712, %v1714
  %v1716 = vsel %vm1708, %v1695, %v1698
  %v1717 = vsel %vm1711, %v1704, 920167782
  %v1718 = vsel %vm1710, %v1701, %v1717
  %v1719 = vsel %vm1709, %v1716, %v1718
  %v1720 = vsel %vm1708, %v1698, %v1701
  %v1721 = vsel %vm1711, %v1707, 1326507024
  %v1722 = vsel %vm1710, %v1704, %v1721
  %v1723 = vsel %vm1709, %v1720, %v1722
  %v1724 = vshll.u32 %v1684, 8
  %v1725 = vmul.u32.u64.compose %v1724, %v1723
  %v1726 = vextract.low.u32 %v1725
  %v1727 = vextract.high.u32 %v1725
  %v1728 = vmul.u32.u64.compose %v1724, %v1719
  %v1729 = vextract.low.u32 %v1728
  %v1730 = vextract.high.u32 %v1728
  %v1731 = vmul.u32 %v1724, %v1715
  %v1732 = vadd.s32 %v1727, %v1729
  %vm1733 = vc.u32 %v1727, %v1729
  %v1734 = vadd.s32 %v1730, 1
  %v1735 = vsel %vm1733, %v1734, %v1730
  %v1736 = vadd.s32 %v1731, %v1735
  %v1737 = vadd.s32 %v1736, 536870912
  %v1738 = vshrl.u32 %v1737, 30
  %v1739 = vshll.u32 %v1738, 30
  %v1740 = vsub.s32 %v1736, %v1739
  %vm1741 = vcmp.lt.s32.totalorder %v1740, 0
  %v1742 = vsub.s32 0, %v1740
  %v1743 = vsel %vm1741, %v1742, %v1740
  %v1744 = vclz %v1743
  %v1745 = vsub.s32 %v1744, 2
  %vm1746 = vcmp.gt.s32.totalorder 0, %v1745
  %v1747 = vsel %vm1746, 0, %v1745
  %v1748 = vsub.s32 32, %v1747
  %v1749 = vshll.u32 %v1740, %v1747
  %v1750 = vshrl.u32 %v1732, %v1748
  %v1751 = vor.u32 %v1749, %v1750
  %v1752 = vsub.s32 4294967266, %v1747
  %v1753 = vadd.s32 %v1752, 127
  %v1754 = vshll.u32 %v1753, 23
  %v1755 = vor.u32 4788187, %v1754
  %v1756 = vand.u32 2147483647, %v1755
  %v1758 = vcvt.s32.f32 %v1751
  %v1759 = vmul.f32 %v1758, %v1756
  %v1760 = vxor.u32 %v1759, 2147483648
  %v1761 = vsel %vm1678, %v1760, %v1759
  %v1762 = vsub.s32 4, %v1738
  %v1763 = vsel %vm1678, %v1762, %v1738
  %v1764 = vsel %vm1677, %v947, %v1761
  %v1765 = vsel %vm1677, 0, %v1763
  %v1766 = vcosq.f32.pop %v1764
  %v1767 = vsinq.f32.pop %v1764
  %vm1768 = vweird.f32 %v947
  %v1769 = vadd.s32 %v1765, 3
  %v1770 = vand.u32 %v1769, 3
  %vm1771 = vcmp.lt.s32.totalorder %v1770, 2
  %vm1772 = vcmp.eq.s32.totalorder %v1770, 0
  %v1773 = vxor.u32 %v1767, 2147483648
  %v1774 = vsel %vm1772, %v1766, %v1773
  %vm1775 = vcmp.eq.s32.totalorder %v1770, 2
  %v1776 = vxor.u32 %v1766, 2147483648
  %v1777 = vsel %vm1775, %v1776, %v1767
  %v1778 = vsel %vm1771, %v1774, %v1777
  %v1779 = vsel %vm1768, nan, %v1778
  %v1780 = vld [vmem:[%s6] sm:$0xf]
  %v1781 = vld [vmem:[%s7] sm:$0x1]
  %v1783 = vlaneseq
  %v1784 = vshrl.u32 %v1783, 7
  %v1785 = vsub.s32 0, %v1784
  %v1786 = vrot.slane %v1781, %v1785
  %v1796 = vcombine.low %v1051, %v1155
  %v1797 = vcombine.low %v1259, %v1363
  %v1798 = vcombine.low %v1467, %v1571
  %v1799 = vcombine.low %v1675, %v1779
  %1800 = vrot.lane.b32.xlu0 %v1796, 80
  %v1801 = vpop.permute.xlu0 %1800
  %1802 = vrot.lane.b32.xlu0 %v1797, 80
  %v1803 = vpop.permute.xlu0 %1802
  %1804 = vrot.lane.b32.xlu0 %v1798, 80
  %v1805 = vpop.permute.xlu0 %1804
  %1806 = vrot.lane.b32.xlu0 %v1799, 80
  %v1807 = vpop.permute.xlu0 %1806
  %vm1808 = vcmask 31744
  %v1809 = vsel %vm1808, %v1801, 0
  %v1811 = vsel %vm1808, %v1803, 0
  %v1813 = vsel %vm1808, %v1805, 0
  %v1815 = vsel %vm1808, %v1807, 0
  %vm1817 = vcmask 1043456
  %v1819 = vsel %vm1817, %v1780, 0
  %1821 = vmatprep.subr.mxu0 0.0
  %1822 = vmatpush1.msra.mxu0 0.0
  %1823 = vmatprep.subr.mxu0 0.0
  %1824 = vmatpush1.msra.mxu0 0.0
  %1825 = vmatprep.subr.mxu0 0.0
  %1826 = vmatpush1.msra.mxu0 0.0
  %1827 = vmatprep.subr.mxu0 0.0
  %1828 = vmatpush1.msra.mxu0 0.0
  %1829 = vmatprep.subr.mxu0 0.0
  %1830 = vmatpush1.msra.mxu0 0.0
  %1831 = vmatprep.subr.mxu0 0.0
  %1832 = vmatpush1.msra.mxu0 0.0
  %1833 = vmatprep.subr.mxu0 0.0
  %1834 = vmatpush1.msra.mxu0 0.0
  %1835 = vmatprep.subr.mxu0 0.0
  %1836 = vmatpush1.msra.mxu0 0.0
  %1837 = vmatprep.subr.mxu0 0.0
  %1838 = vmatpush1.msra.mxu0 0.0
  %1839 = vmatprep.subr.mxu0 0.0
  %1840 = vmatpush1.msra.mxu0 0.0
  %1841 = vmatprep.subr.mxu0 0.0
  %1842 = vmatpush1.msra.mxu0 0.0
  %1843 = vmatprep.subr.mxu0 0.0
  %1844 = vmatpush1.msra.mxu0 0.0
  %1845 = vmatprep.subr.mxu0 0.0
  %1846 = vmatpush1.msra.mxu0 0.0
  %1847 = vmatprep.subr.mxu0 0.0
  %1848 = vmatpush1.msra.mxu0 0.0
  %1849 = vmatprep.subr.mxu0 0.0
  %1850 = vmatpush1.msra.mxu0 0.0
  %1851 = vmatprep.subr.mxu0 0.0
  %1852 = vmatpush1.msra.mxu0 %v1819
  %1853 = vmatprep.subr.mxu0 0.0
  %1854 = vmatpush2.msra.mxu0 0.0
  %1855 = vmatprep.subr.mxu0 0.0
  %1856 = vmatpush2.msra.mxu0 0.0
  %1857 = vmatprep.subr.mxu0 0.0
  %1858 = vmatpush2.msra.mxu0 0.0
  %1859 = vmatprep.subr.mxu0 0.0
  %1860 = vmatpush2.msra.mxu0 0.0
  %1861 = vmatprep.subr.mxu0 0.0
  %1862 = vmatpush2.msra.mxu0 0.0
  %1863 = vmatprep.subr.mxu0 0.0
  %1864 = vmatpush2.msra.mxu0 0.0
  %1865 = vmatprep.subr.mxu0 0.0
  %1866 = vmatpush2.msra.mxu0 0.0
  %1867 = vmatprep.subr.mxu0 0.0
  %1868 = vmatpush2.msra.mxu0 0.0
  %1869 = vmatprep.subr.mxu0 0.0
  %1870 = vmatpush2.msra.mxu0 0.0
  %1871 = vmatprep.subr.mxu0 0.0
  %1872 = vmatpush2.msra.mxu0 0.0
  %1873 = vmatprep.subr.mxu0 0.0
  %1874 = vmatpush2.msra.mxu0 0.0
  %1875 = vmatprep.subr.mxu0 0.0
  %1876 = vmatpush2.msra.mxu0 0.0
  %1877 = vmatprep.subr.mxu0 0.0
  %1878 = vmatpush2.msra.mxu0 0.0
  %1879 = vmatprep.subr.mxu0 0.0
  %1880 = vmatpush2.msra.mxu0 0.0
  %1881 = vmatprep.subr.mxu0 0.0
  %1882 = vmatpush2.msra.mxu0 0.0
  %1883 = vmatprep.subr.mxu0 0.0
  %1884 = vmatpush2.msra.mxu0 0.0
  %1885 = vmatprep.mubr.f32.mxu0 0.0
  %1886 = vmatmul.mubr.f32.gmra.mxu0 %v1809
  %v1887 = vpop.f32.mrf.mxu0
  %v1888 = vadd.f32 %v1786, %v1887
  %v1889 = vpop.f32.mrf.mxu0
  %1890 = vmatprep.mubr.f32.mxu0 0.0
  %1891 = vmatmul.mubr.f32.gmra.mxu0 %v1811
  %v1892 = vpop.f32.mrf.mxu0
  %v1893 = vadd.f32 %v1786, %v1892
  %v1894 = vpop.f32.mrf.mxu0
  %1895 = vmatprep.mubr.f32.mxu0 0.0
  %1896 = vmatmul.mubr.f32.gmra.mxu0 %v1813
  %v1897 = vpop.f32.mrf.mxu0
  %v1898 = vadd.f32 %v1786, %v1897
  %v1899 = vpop.f32.mrf.mxu0
  %1900 = vmatprep.mubr.f32.mxu0 0.0
  %1901 = vmatmul.mubr.f32.gmra.mxu0 %v1815
  %v1902 = vpop.f32.mrf.mxu0
  %v1903 = vadd.f32 %v1786, %v1902
  %v1904 = vpop.f32.mrf.mxu0
  %1905 = vdwg.mxu0
  %v1910 = vcombine.high %v1888, %v1888
  %v1911 = vcombine.high %v1893, %v1893
  %v1912 = vcombine.high %v1898, %v1898
  %v1913 = vcombine.high %v1903, %v1903
  %v1918 = vcombine.high %v202, %v202
  %v1919 = vcombine.high %v203, %v203
  %v1920 = vcombine.high %v204, %v204
  %v1921 = vcombine.high %v205, %v205
  %v1922 = vcombine.high %v206, %v206
  %v1923 = vcombine.high %v207, %v207
  %v1924 = vcombine.high %v208, %v208
  %v1925 = vcombine.high %v209, %v209
  %vm1926 = vcmask 1041408
  %vm1927 = vcmask 1045508
  %vm1928 = vmor %vm1926, %vm1927
  %v1929 = vrot.slane %v202, 6
  %v1930 = vrot.slane %v1929, 4
  %v1931 = vrot.slane %v1918, 6
  %v1932 = vsel %vm1928, %v1930, %v1931
  %v1933 = vrot.slane %v203, 6
  %v1934 = vrot.slane %v1933, 4
  %v1935 = vrot.slane %v1919, 6
  %v1936 = vsel %vm1928, %v1934, %v1935
  %v1937 = vrot.slane %v204, 6
  %v1938 = vrot.slane %v1937, 4
  %v1939 = vrot.slane %v1920, 6
  %v1940 = vsel %vm1928, %v1938, %v1939
  %v1941 = vrot.slane %v205, 6
  %v1942 = vrot.slane %v1941, 4
  %v1943 = vrot.slane %v1921, 6
  %v1944 = vsel %vm1928, %v1942, %v1943
  %v1945 = vrot.slane %v206, 6
  %v1946 = vrot.slane %v1945, 4
  %v1947 = vrot.slane %v1922, 6
  %v1948 = vsel %vm1928, %v1946, %v1947
  %v1949 = vrot.slane %v207, 6
  %v1950 = vrot.slane %v1949, 4
  %v1951 = vrot.slane %v1923, 6
  %v1952 = vsel %vm1928, %v1950, %v1951
  %v1953 = vrot.slane %v208, 6
  %v1954 = vrot.slane %v1953, 4
  %v1955 = vrot.slane %v1924, 6
  %v1956 = vsel %vm1928, %v1954, %v1955
  %v1957 = vrot.slane %v209, 6
  %v1958 = vrot.slane %v1957, 4
  %v1959 = vrot.slane %v1925, 6
  %v1960 = vsel %vm1928, %v1958, %v1959
  %v1969 = vadd.f32 %v1888, %v1932
  %v1970 = vadd.f32 %v1910, %v1936
  %v1971 = vadd.f32 %v1893, %v1940
  %v1972 = vadd.f32 %v1911, %v1944
  %v1973 = vadd.f32 %v1898, %v1948
  %v1974 = vadd.f32 %v1912, %v1952
  %v1975 = vadd.f32 %v1903, %v1956
  %v1976 = vadd.f32 %v1913, %v1960
  %v1977 = vmul.f32 %v1969, 0.5
  %v1978 = vmul.f32 %v1970, 0.5
  %v1979 = vmul.f32 %v1971, 0.5
  %v1980 = vmul.f32 %v1972, 0.5
  %v1981 = vmul.f32 %v1973, 0.5
  %v1982 = vmul.f32 %v1974, 0.5
  %v1983 = vmul.f32 %v1975, 0.5
  %v1984 = vmul.f32 %v1976, 0.5
  %v1985 = vsel %vm1808, %v1977, %v1888
  %v1986 = vsel %vm1808, %v1978, %v1910
  %v1987 = vsel %vm1808, %v1979, %v1893
  %v1988 = vsel %vm1808, %v1980, %v1911
  %v1989 = vsel %vm1808, %v1981, %v1898
  %v1990 = vsel %vm1808, %v1982, %v1912
  %v1991 = vsel %vm1808, %v1983, %v1903
  %v1992 = vsel %vm1808, %v1984, %v1913
  %vm1993 = vcmask 60416
  %1994 = vst.msk [vmem:[%s8] sm:$0xf] %vm1993, %v1985
  %1995 = vst.msk [vmem:[%s8 + $0x4] sm:$0xf] %vm1993, %v1986
  %1996 = vst.msk [vmem:[%s8 + $0x8] sm:$0xf] %vm1993, %v1987
  %1997 = vst.msk [vmem:[%s8 + $0xc] sm:$0xf] %vm1993, %v1988
  %1998 = vst.msk [vmem:[%s8 + $0x10] sm:$0xf] %vm1993, %v1989
  %1999 = vst.msk [vmem:[%s8 + $0x14] sm:$0xf] %vm1993, %v1990
  %2000 = vst.msk [vmem:[%s8 + $0x18] sm:$0xf] %vm1993, %v1991
  %2001 = vst.msk [vmem:[%s8 + $0x1c] sm:$0xf] %vm1993, %v1992
  // Predicated region
  $region34: #{hyperconv_block_pallas.1} parent=0 // pred_check
    _
  $region35: #{hyperconv_block_pallas.1} parent=0 // pred_check_branch
    %2003 = sbr.rel (0) target = $region37
  $region36: #{hyperconv_block_pallas.1} parent=0 // pred_region
    _
  $region37: #{hyperconv_block_pallas.1} parent=0 // pred_fallthru
    _
  // Predicated region
  $region38: #{hyperconv_block_pallas.1} parent=0 // pred_check
    _
  $region39: #{hyperconv_block_pallas.1} parent=0 // pred_check_branch
    %2005 = sbr.rel (0) target = $region41
  $region40: #{hyperconv_block_pallas.1} parent=0 // pred_region
    _
  $region41: #{hyperconv_block_pallas.1} parent=0 // pred_fallthru
    _

</llo_original>
